<compile_context>
chip_gen: v6e
topology: v6e:2x2x1
jax: 0.10.0
libtpu: 0.0.40
codegen_flags: <defaults>
</compile_context>

<pallas_src>
import functools

import jax
import jax.numpy as jnp
from jax import lax
from jax.experimental import pallas as pl
from jax.experimental.pallas import tpu as pltpu

LANE = 128
BN_EPS = 1e-5
TM_MAX = 512          # rows per M tile; every conv in this net has M <= 512


def _round_up(x, m):
    return ((x + m - 1) // m) * m


def _pad2d(x, rows, cols):
    pr, pc = rows - x.shape[0], cols - x.shape[1]
    if pr == 0 and pc == 0:
        return x
    return jnp.pad(x, ((0, pr), (0, pc)))


# ----------------------------- in-kernel helpers ----------------------------

def _hash_dropout(y, row, col, keep_prob, seed):
    """F.dropout(training=True) via integer-hash PRNG (interpret-safe)."""
    ncol = y.shape[1]
    h = (row * ncol + col).astype(jnp.uint32) ^ jnp.uint32(seed & 0xFFFFFFFF)
    h = h * jnp.uint32(2654435761)
    h = h ^ (h >> 15)
    h = h * jnp.uint32(2246822519)
    h = h ^ (h >> 13)
    u = (h >> 9).astype(jnp.float32) * (1.0 / 8388608.0)    # 23 random bits
    return jnp.where(u < keep_prob, y * (1.0 / keep_prob), 0.0)


# ------------------------------ Pallas kernels ------------------------------

def _conv_fused_kernel(p_ref, w_ref, b_ref, *refs, use_bn, add_res, relu,
                       keep_prob, seed, m_rows, tm, eps):
    """Whole conv as one matmul (single K tile) + fused epilogue.

    Epilogue: bias -> [training-mode BN over the full M (requires n_m == 1)]
    -> [residual add] -> [ReLU] -> [dropout].  bf16 inputs, f32 math.
    """
    i = 0
    if use_bn:
        g_ref, beta_ref = refs[0], refs[1]
        i = 2
    if add_res:
        res_ref = refs[i]
        i += 1
    o_ref = refs[i]

    m = pl.program_id(0)                                   # top level only
    y = jnp.dot(p_ref[...], w_ref[...], preferred_element_type=jnp.float32)
    y = y + b_ref[...]
    rows, cols = y.shape
    row = m * tm + lax.broadcasted_iota(jnp.int32, (rows, cols), 0)
    valid = row < m_rows                                   # mask padded M rows

    if use_bn:
        inv_m = 1.0 / float(m_rows)
        mean = jnp.sum(jnp.where(valid, y, 0.0), axis=0, keepdims=True) * inv_m
        d = jnp.where(valid, y - mean, 0.0)                # two-pass variance
        var = jnp.sum(d * d, axis=0, keepdims=True) * inv_m
        scale = g_ref[...] * lax.rsqrt(var + eps)
        y = y * scale + (beta_ref[...] - mean * scale)
    if add_res:
        y = y + res_ref[...].astype(jnp.float32)
    if relu:
        y = jnp.maximum(y, 0.0)
    if keep_prob is not None:
        col = lax.broadcasted_iota(jnp.int32, (rows, cols), 1)
        y = _hash_dropout(y, row, col, keep_prob, seed)
    o_ref[...] = y.astype(o_ref.dtype)


def _conv_stats_kernel(p_ref, w_ref, b_ref, y_ref, stats_ref, *, m_rows, tm):
    """Fallback (M > TM_MAX) kernel A: conv matmul (bf16 out) + partial stats."""
    m = pl.program_id(0)
    y = jnp.dot(p_ref[...], w_ref[...], preferred_element_type=jnp.float32)
    y = y + b_ref[...]
    y_ref[...] = y.astype(y_ref.dtype)                     # bf16 intermediate
    rows, cols = y.shape
    row = m * tm + lax.broadcasted_iota(jnp.int32, (rows, cols), 0)
    ym = jnp.where(row < m_rows, y, 0.0)
    s = jnp.sum(ym, axis=0, keepdims=True)
    sq = jnp.sum(ym * ym, axis=0, keepdims=True)
    ridx = lax.broadcasted_iota(jnp.int32, (8, cols), 0)
    stats_ref[0] = jnp.where(ridx == 0, s, jnp.where(ridx == 1, sq, 0.0))


def _bn_apply_kernel(y_ref, stats_ref, g_ref, beta_ref, *refs, add_res, relu,
                     m_rows, eps, keep_prob, seed, tm):
    """Fallback kernel B: finish BN from partial stats + residual/ReLU/dropout."""
    if add_res:
        res_ref, o_ref = refs
    else:
        (o_ref,) = refs
    m = pl.program_id(0)
    y = y_ref[...].astype(jnp.float32)
    tot = jnp.sum(stats_ref[...], axis=0)                  # (8, cp)
    inv_m = 1.0 / float(m_rows)
    mean = tot[0:1, :] * inv_m
    # One-pass E[x^2]-mean^2 (fallback path only); clamped for safety.
    var = jnp.maximum(tot[1:2, :] * inv_m - mean * mean, 0.0)
    scale = g_ref[...] * lax.rsqrt(var + eps)
    y = y * scale + (beta_ref[...] - mean * scale)
    if add_res:
        y = y + res_ref[...].astype(jnp.float32)
    if relu:
        y = jnp.maximum(y, 0.0)
    if keep_prob is not None:
        rows, cols = y.shape
        row = m * tm + lax.broadcasted_iota(jnp.int32, (rows, cols), 0)
        col = lax.broadcasted_iota(jnp.int32, (rows, cols), 1)
        y = _hash_dropout(y, row, col, keep_prob, seed)
    o_ref[...] = y.astype(o_ref.dtype)


# ------------------------------ Host wrappers --------------------------------

def _im2col(x, kh, kw, stride, pad):
    """NHWC -> patches [N*Ho*Wo, kh*kw*C] (host-side data-movement glue)."""
    n, h, w, c = x.shape
    xp = jnp.pad(x, ((0, 0), (pad, pad), (pad, pad), (0, 0)))
    ho = (h + 2 * pad - kh) // stride + 1
    wo = (w + 2 * pad - kw) // stride + 1
    cols = []
    for i in range(kh):
        for j in range(kw):
            cols.append(xp[:, i:i + stride * ho:stride,
                           j:j + stride * wo:stride, :])
    patches = jnp.concatenate(cols, axis=-1)
    return patches.reshape(n * ho * wo, kh * kw * c), (n, ho, wo)


def conv2d_pallas(x, w, b, *, stride, pad, gamma=None, beta=None,
                  residual=None, residual_padded=None, relu=False,
                  dropout_p=None, dropout_seed=0, return_padded=False):
    """Conv2d (+ optional fused training-mode BN / residual / ReLU / dropout).

    Returns NHWC bfloat16 activations, or the padded (mp, cp) matrix when
    return_padded=True (used to feed downsample outputs straight back in as
    residuals without a slice/re-pad round trip).
    """
    kh, kw, cin, cout = w.shape
    patches, (n, ho, wo) = _im2col(x, kh, kw, stride, pad)
    m_rows, k_dim = patches.shape

    cp = _round_up(cout, LANE)
    kp = _round_up(k_dim, LANE)            # single K tile (kp <= 2304 here)
    mp16 = _round_up(m_rows, 16)           # bf16 packs 2 rows per sublane
    if mp16 <= TM_MAX:
        tm, mp, n_m = mp16, mp16, 1
    else:
        tm = TM_MAX
        mp = _round_up(mp16, TM_MAX)
        n_m = mp // tm

    p_pad = _pad2d(patches, mp, kp).astype(jnp.bfloat16)
    w_mat = _pad2d(w.reshape(kh * kw * cin, cout), kp, cp).astype(jnp.bfloat16)
    b_row = _pad2d(b.astype(jnp.float32).reshape(1, cout), 1, cp)

    use_bn = gamma is not None
    add_res = (residual is not None) or (residual_padded is not None)
    keep_prob = None if dropout_p is None else float(1.0 - dropout_p)

    res_mat = None
    if add_res:
        if residual_padded is not None:
            r = residual_padded
            if r.shape != (mp, cp):        # defensive re-pad (normally a no-op)
                r = _pad2d(r[:m_rows, :cout], mp, cp)
        else:
            r = residual.reshape(m_rows, cout)
            if r.dtype != jnp.bfloat16:
                r = r.astype(jnp.bfloat16)
            r = _pad2d(r, mp, cp)
        res_mat = r if r.dtype == jnp.bfloat16 else r.astype(jnp.bfloat16)

    g_row = beta_row = None
    if use_bn:
        g_row = _pad2d(gamma.astype(jnp.float32).reshape(1, cout), 1, cp)
        beta_row = _pad2d(beta.astype(jnp.float32).reshape(1, cout), 1, cp)

    # VMEM budget from the chosen tiles (double-buffered blocks), 4x margin,
    # capped well under v7x's 64 MiB physical VMEM.
    est = (2 * tm * kp * 2 + 2 * kp * cp * 2 + 2 * tm * cp * 2
           + (2 * tm * cp * 2 if add_res else 0)
           + 8 * cp * 4 + 2 * 8 * cp * 4 * n_m)
    vmem_limit = int(min(48 * 2 ** 20, max(16 * 2 ** 20, 4 * est)))
    cparams = pltpu.CompilerParams(dimension_semantics=("parallel",),
                                   vmem_limit_bytes=vmem_limit)

    if (not use_bn) or n_m == 1:
        # -------- fully fused single pallas_call (the common path here) -----
        kern = functools.partial(
            _conv_fused_kernel, use_bn=use_bn, add_res=add_res, relu=relu,
            keep_prob=keep_prob, seed=int(dropout_seed), m_rows=m_rows,
            tm=tm, eps=BN_EPS)
        inputs = [p_pad, w_mat, b_row]
        in_specs = [pl.BlockSpec((tm, kp), lambda m: (m, 0)),
                    pl.BlockSpec((kp, cp), lambda m: (0, 0)),
                    pl.BlockSpec((1, cp), lambda m: (0, 0))]
        if use_bn:
            inputs += [g_row, beta_row]
            in_specs += [pl.BlockSpec((1, cp), lambda m: (0, 0)),
                         pl.BlockSpec((1, cp), lambda m: (0, 0))]
        if add_res:
            inputs.append(res_mat)
            in_specs.append(pl.BlockSpec((tm, cp), lambda m: (m, 0)))
        out = pl.pallas_call(
            kern,
            out_shape=jax.ShapeDtypeStruct((mp, cp), jnp.bfloat16),
            grid_spec=pltpu.PrefetchScalarGridSpec(
                num_scalar_prefetch=0, grid=(n_m,),
                in_specs=in_specs,
                out_specs=pl.BlockSpec((tm, cp), lambda m: (m, 0))),
            compiler_params=cparams,
        )(*inputs)
    else:
        # -------- fallback for M > TM_MAX: split stats + apply --------------
        kern_a = functools.partial(_conv_stats_kernel, m_rows=m_rows, tm=tm)
        y_full, stats = pl.pallas_call(
            kern_a,
            out_shape=(jax.ShapeDtypeStruct((mp, cp), jnp.bfloat16),
                       jax.ShapeDtypeStruct((n_m, 8, cp), jnp.float32)),
            grid_spec=pltpu.PrefetchScalarGridSpec(
                num_scalar_prefetch=0, grid=(n_m,),
                in_specs=[pl.BlockSpec((tm, kp), lambda m: (m, 0)),
                          pl.BlockSpec((kp, cp), lambda m: (0, 0)),
                          pl.BlockSpec((1, cp), lambda m: (0, 0))],
                out_specs=(pl.BlockSpec((tm, cp), lambda m: (m, 0)),
                           pl.BlockSpec((1, 8, cp), lambda m: (m, 0, 0)))),
            compiler_params=cparams,
        )(p_pad, w_mat, b_row)

        kern_b = functools.partial(
            _bn_apply_kernel, add_res=add_res, relu=relu, m_rows=m_rows,
            eps=BN_EPS, keep_prob=keep_prob, seed=int(dropout_seed), tm=tm)
        inputs = [y_full, stats, g_row, beta_row]
        in_specs = [pl.BlockSpec((tm, cp), lambda m: (m, 0)),
                    pl.BlockSpec((n_m, 8, cp), lambda m: (0, 0, 0)),
                    pl.BlockSpec((1, cp), lambda m: (0, 0)),
                    pl.BlockSpec((1, cp), lambda m: (0, 0))]
        if add_res:
            inputs.append(res_mat)
            in_specs.append(pl.BlockSpec((tm, cp), lambda m: (m, 0)))
        out = pl.pallas_call(
            kern_b,
            out_shape=jax.ShapeDtypeStruct((mp, cp), jnp.bfloat16),
            grid_spec=pltpu.PrefetchScalarGridSpec(
                num_scalar_prefetch=0, grid=(n_m,),
                in_specs=in_specs,
                out_specs=pl.BlockSpec((tm, cp), lambda m: (m, 0))),
            compiler_params=cparams,
        )(*inputs)

    if return_padded:
        return out
    return out[:m_rows, :cout].reshape(n, ho, wo, cout)


def maxpool2x2(x):
    # (2,2,2,256) ~ 4 KB at this point: plain jnp beats a pallas_call + 4
    # strided-slice materializations (per perf review).
    n, h, w, c = x.shape
    return x.reshape(n, h // 2, 2, w // 2, 2, c).max(axis=(2, 4))


# ------------------------------ Model (glue) ---------------------------------

def _conv_params(key, kh, kw, cin, cout):
    k1, k2 = jax.random.split(key)
    return {"w": 0.1 * jax.random.normal(k1, (kh, kw, cin, cout), jnp.float32),
            "b": 0.05 * jax.random.normal(k2, (cout,), jnp.float32)}


def _bn_params(key, c):
    k1, k2 = jax.random.split(key)
    return {"gamma": 1.0 + 0.05 * jax.random.normal(k1, (c,), jnp.float32),
            "beta": 0.05 * jax.random.normal(k2, (c,), jnp.float32)}


def _block_params(key, cin, cout, downsample):
    keys = jax.random.split(key, 5)
    p = {"conv1": _conv_params(keys[0], 3, 3, cin, cout),
         "bn1": _bn_params(keys[1], cout),
         "conv2": _conv_params(keys[2], 3, 3, cout, cout),
         "bn2": _bn_params(keys[3], cout),
         "downsample": downsample}
    if downsample:
        p["ds"] = _conv_params(keys[4], 1, 1, cin, cout)
    return p


def init_resnet_params(key):
    keys = jax.random.split(key, 16)
    return {
        "conv1": _conv_params(keys[0], 3, 3, 3, 32),
        "bn1": _bn_params(keys[1], 32),
        "bb20": _block_params(keys[2], 32, 32, False),
        "bb21": _block_params(keys[3], 32, 32, False),
        "bb30": _block_params(keys[4], 32, 64, True),
        "bb31": _block_params(keys[5], 64, 64, False),
        "bb32": _block_params(keys[6], 64, 64, False),
        "bb33": _block_params(keys[7], 64, 64, False),
        "bb40": _block_params(keys[8], 64, 128, True),
        "bb41": _block_params(keys[9], 128, 128, False),
        "bb42": _block_params(keys[10], 128, 128, False),
        "bb43": _block_params(keys[11], 128, 128, False),
        "bb50": _block_params(keys[12], 128, 256, True),
        "bb51": _block_params(keys[13], 256, 256, False),
    }


def basic_block(x, p, stride):
    y = conv2d_pallas(x, p["conv1"]["w"], p["conv1"]["b"], stride=stride, pad=1,
                      gamma=p["bn1"]["gamma"], beta=p["bn1"]["beta"], relu=True)
    if p["downsample"]:
        # Downsample conv output stays in padded (mp, cp) layout and is fed
        # directly into conv2's fused epilogue as the residual.
        res_mat = conv2d_pallas(x, p["ds"]["w"], p["ds"]["b"], stride=2, pad=0,
                                return_padded=True)
        y = conv2d_pallas(y, p["conv2"]["w"], p["conv2"]["b"], stride=1, pad=1,
                          gamma=p["bn2"]["gamma"], beta=p["bn2"]["beta"],
                          residual_padded=res_mat, relu=True)
    else:
        y = conv2d_pallas(y, p["conv2"]["w"], p["conv2"]["b"], stride=1, pad=1,
                          gamma=p["bn2"]["gamma"], beta=p["bn2"]["beta"],
                          residual=x, relu=True)
    return y


def resnet_forward(x_nchw, params, dropout_seed=0):
    # Accept NCHW (PyTorch) and compute in NHWC bf16 internally.
    x = jnp.transpose(x_nchw, (0, 2, 3, 1)).astype(jnp.bfloat16)
    # Stem: conv -> BN -> ReLU -> fused dropout (F.dropout defaults train=True).
    x = conv2d_pallas(x, params["conv1"]["w"], params["conv1"]["b"],
                      stride=1, pad=1, gamma=params["bn1"]["gamma"],
                      beta=params["bn1"]["beta"], relu=True,
                      dropout_p=0.6, dropout_seed=dropout_seed)
    x = basic_block(x, params["bb20"], 1)
    x = basic_block(x, params["bb21"], 1)
    x = basic_block(x, params["bb30"], 2)
    x = basic_block(x, params["bb31"], 1)
    x = basic_block(x, params["bb32"], 1)
    x = basic_block(x, params["bb33"], 1)
    x = basic_block(x, params["bb40"], 2)
    x = basic_block(x, params["bb41"], 1)
    x = basic_block(x, params["bb42"], 1)
    x = basic_block(x, params["bb43"], 1)
    x = basic_block(x, params["bb50"], 2)
    x = basic_block(x, params["bb51"], 1)
    x = maxpool2x2(x)
    n = x.shape[0]
    # Flatten in NCHW order to match x.view(x.size(0), -1) on the torch side.
    return jnp.transpose(x, (0, 3, 1, 2)).reshape(n, -1).astype(jnp.float32)


if __name__ == "__main__":
    key = jax.random.PRNGKey(0)
    kx, kp_ = jax.random.split(key)
    x = jax.random.normal(kx, (2, 3, 16, 16), jnp.float32)   # NCHW input
    params = init_resnet_params(kp_)

    out = resnet_forward(x, params, dropout_seed=0)
    out = jax.block_until_ready(out)

    # 16 -> 16 -> 8 -> 4 -> 2 -> maxpool -> 1; 256 channels => (2, 256)
    assert out.shape == (2, 256), out.shape
    assert bool(jnp.all(jnp.isfinite(out)))
    print("KERNEL_OK")
</pallas_src>

<mosaic_0001>
module attributes {stable_mosaic.version = 11 : i64} {
  func.func @_conv_fused_kernel(%arg0: i32, %arg1: memref<512x128xbf16, #tpu.memory_space<vmem>>, %arg2: memref<128x128xbf16, #tpu.memory_space<vmem>>, %arg3: memref<1x128xf32, #tpu.memory_space<vmem>>, %arg4: memref<1x128xf32, #tpu.memory_space<vmem>>, %arg5: memref<1x128xf32, #tpu.memory_space<vmem>>, %arg6: memref<512x128xbf16, #tpu.memory_space<vmem>>) attributes {dimension_semantics = [#tpu.dimension_semantics<parallel>], iteration_bounds = array<i64: 1>, scalar_prefetch = 0 : i64, scratch_operands = 0 : i64, tpu.core_type = #tpu.core_type<tc>, window_params = [{transform_indices = @transform_0, window_bounds = array<i64: 512, 128>}, {pipeline_mode = #tpu.pipeline_mode<synchronous>, transform_indices = @transform_1, window_bounds = array<i64: 128, 128>}, {pipeline_mode = #tpu.pipeline_mode<synchronous>, transform_indices = @transform_2, window_bounds = array<i64: 1, 128>}, {pipeline_mode = #tpu.pipeline_mode<synchronous>, transform_indices = @transform_3, window_bounds = array<i64: 1, 128>}, {pipeline_mode = #tpu.pipeline_mode<synchronous>, transform_indices = @transform_4, window_bounds = array<i64: 1, 128>}, {transform_indices = @transform_5, window_bounds = array<i64: 512, 128>}]} {
    %c0 = arith.constant 0 : index
    %c0_0 = arith.constant 0 : index
    %0 = vector.load %arg1[%c0, %c0_0] : memref<512x128xbf16, #tpu.memory_space<vmem>>, vector<512x128xbf16>
    %c0_1 = arith.constant 0 : index
    %c0_2 = arith.constant 0 : index
    %1 = vector.load %arg2[%c0_1, %c0_2] : memref<128x128xbf16, #tpu.memory_space<vmem>>, vector<128x128xbf16>
    %cst = arith.constant dense<0.000000e+00> : vector<512x128xf32>
    %2 = tpu.matmul %0, %1, %cst {dimension_numbers = #tpu.dot_dimension_numbers<[1], [0], [0], [1], [0, 0, 1, 1], [], []>} : vector<512x128xbf16>, vector<128x128xbf16>, vector<512x128xf32> -> vector<512x128xf32>
    %c0_3 = arith.constant 0 : index
    %c0_4 = arith.constant 0 : index
    %3 = vector.load %arg3[%c0_3, %c0_4] : memref<1x128xf32, #tpu.memory_space<vmem>>, vector<1x128xf32>
    %4 = vector.broadcast %3 : vector<1x128xf32> to vector<512x128xf32>
    %5 = arith.addf %2, %4 : vector<512x128xf32>
    %c512_i32 = arith.constant 512 : i32
    %6 = arith.muli %arg0, %c512_i32 : i32
    %7 = tpu.iota {dimensions = array<i32: 0>} : vector<512x128xi32>
    %8 = vector.broadcast %6 : i32 to vector<512x128xi32>
    %9 = arith.addi %8, %7 : vector<512x128xi32>
    %c512_i32_5 = arith.constant 512 : i32
    %10 = vector.broadcast %c512_i32_5 : i32 to vector<512x128xi32>
    %11 = arith.cmpi slt, %9, %10 : vector<512x128xi32>
    %cst_6 = arith.constant 0.000000e+00 : f32
    %12 = vector.broadcast %cst_6 : f32 to vector<512x128xf32>
    %13 = arith.select %11, %5, %12 : vector<512x128xi1>, vector<512x128xf32>
    %cst_7 = arith.constant dense<0.000000e+00> : vector<128xf32>
    %14 = vector.multi_reduction <add>, %13, %cst_7 [0] : vector<512x128xf32> to vector<128xf32>
    %15 = vector.shape_cast %14 : vector<128xf32> to vector<1x128xf32>
    %cst_8 = arith.constant 0.001953125 : f32
    %16 = vector.broadcast %cst_8 : f32 to vector<1x128xf32>
    %17 = arith.mulf %15, %16 : vector<1x128xf32>
    %18 = vector.broadcast %17 : vector<1x128xf32> to vector<512x128xf32>
    %19 = arith.subf %5, %18 : vector<512x128xf32>
    %cst_9 = arith.constant 0.000000e+00 : f32
    %20 = vector.broadcast %cst_9 : f32 to vector<512x128xf32>
    %21 = arith.select %11, %19, %20 : vector<512x128xi1>, vector<512x128xf32>
    %22 = arith.mulf %21, %21 : vector<512x128xf32>
    %cst_10 = arith.constant dense<0.000000e+00> : vector<128xf32>
    %23 = vector.multi_reduction <add>, %22, %cst_10 [0] : vector<512x128xf32> to vector<128xf32>
    %24 = vector.shape_cast %23 : vector<128xf32> to vector<1x128xf32>
    %cst_11 = arith.constant 0.001953125 : f32
    %25 = vector.broadcast %cst_11 : f32 to vector<1x128xf32>
    %26 = arith.mulf %24, %25 : vector<1x128xf32>
    %c0_12 = arith.constant 0 : index
    %c0_13 = arith.constant 0 : index
    %27 = vector.load %arg4[%c0_12, %c0_13] : memref<1x128xf32, #tpu.memory_space<vmem>>, vector<1x128xf32>
    %cst_14 = arith.constant 9.99999974E-6 : f32
    %28 = vector.broadcast %cst_14 : f32 to vector<1x128xf32>
    %29 = arith.addf %26, %28 : vector<1x128xf32>
    %30 = math.rsqrt %29 : vector<1x128xf32>
    %31 = arith.mulf %27, %30 : vector<1x128xf32>
    %32 = vector.broadcast %31 : vector<1x128xf32> to vector<512x128xf32>
    %33 = arith.mulf %5, %32 : vector<512x128xf32>
    %c0_15 = arith.constant 0 : index
    %c0_16 = arith.constant 0 : index
    %34 = vector.load %arg5[%c0_15, %c0_16] : memref<1x128xf32, #tpu.memory_space<vmem>>, vector<1x128xf32>
    %35 = arith.mulf %17, %31 : vector<1x128xf32>
    %36 = arith.subf %34, %35 : vector<1x128xf32>
    %37 = vector.broadcast %36 : vector<1x128xf32> to vector<512x128xf32>
    %38 = arith.addf %33, %37 : vector<512x128xf32>
    %cst_17 = arith.constant 0.000000e+00 : f32
    %39 = vector.broadcast %cst_17 : f32 to vector<512x128xf32>
    %40 = arith.maximumf %38, %39 : vector<512x128xf32>
    %41 = tpu.iota {dimensions = array<i32: 1>} : vector<512x128xi32>
    %c128_i32 = arith.constant 128 : i32
    %42 = vector.broadcast %c128_i32 : i32 to vector<512x128xi32>
    %43 = arith.muli %9, %42 : vector<512x128xi32>
    %44 = arith.addi %43, %41 : vector<512x128xi32>
    %c0_i32 = arith.constant 0 : i32
    %45 = vector.broadcast %c0_i32 : i32 to vector<512x128xi32>
    %46 = arith.xori %44, %45 : vector<512x128xi32>
    %c-1640531535_i32 = arith.constant -1640531535 : i32
    %47 = vector.broadcast %c-1640531535_i32 : i32 to vector<512x128xi32>
    %48 = arith.muli %46, %47 : vector<512x128xi32>
    %c15_i32 = arith.constant 15 : i32
    %49 = vector.broadcast %c15_i32 : i32 to vector<512x128xi32>
    %50 = arith.shrui %48, %49 : vector<512x128xi32>
    %51 = arith.xori %48, %50 : vector<512x128xi32>
    %c-2048144777_i32 = arith.constant -2048144777 : i32
    %52 = vector.broadcast %c-2048144777_i32 : i32 to vector<512x128xi32>
    %53 = arith.muli %51, %52 : vector<512x128xi32>
    %c13_i32 = arith.constant 13 : i32
    %54 = vector.broadcast %c13_i32 : i32 to vector<512x128xi32>
    %55 = arith.shrui %53, %54 : vector<512x128xi32>
    %56 = arith.xori %53, %55 : vector<512x128xi32>
    %c9_i32 = arith.constant 9 : i32
    %57 = vector.broadcast %c9_i32 : i32 to vector<512x128xi32>
    %58 = arith.shrui %56, %57 : vector<512x128xi32>
    %59 = arith.uitofp %58 : vector<512x128xi32> to vector<512x128xf32>
    %cst_18 = arith.constant 1.1920929E-7 : f32
    %60 = vector.broadcast %cst_18 : f32 to vector<512x128xf32>
    %61 = arith.mulf %59, %60 : vector<512x128xf32>
    %cst_19 = arith.constant 4.000000e-01 : f32
    %62 = vector.broadcast %cst_19 : f32 to vector<512x128xf32>
    %63 = arith.cmpf olt, %61, %62 : vector<512x128xf32>
    %cst_20 = arith.constant 2.500000e+00 : f32
    %64 = vector.broadcast %cst_20 : f32 to vector<512x128xf32>
    %65 = arith.mulf %40, %64 : vector<512x128xf32>
    %cst_21 = arith.constant 0.000000e+00 : f32
    %66 = vector.broadcast %cst_21 : f32 to vector<512x128xf32>
    %67 = arith.select %63, %65, %66 : vector<512x128xi1>, vector<512x128xf32>
    %68 = arith.truncf %67 : vector<512x128xf32> to vector<512x128xbf16>
    %c0_22 = arith.constant 0 : index
    %c0_23 = arith.constant 0 : index
    %69 = vector.load %arg6[%c0_22, %c0_23] : memref<512x128xbf16, #tpu.memory_space<vmem>>, vector<512x128xbf16>
    tpu.vector_store %arg6[%c0_22, %c0_23], %68 {strides = array<i32>} : memref<512x128xbf16, #tpu.memory_space<vmem>>, vector<512x128xbf16>,
    return
  }
  func.func @transform_0(%arg0: i32) -> (i32, i32) {
    %c0_i32 = arith.constant 0 : i32
    %c0_i32_0 = arith.constant 0 : i32
    return %arg0, %c0_i32 : i32, i32
  }
  func.func @transform_1(%arg0: i32) -> (i32, i32) {
    %c0_i32 = arith.constant 0 : i32
    %c0_i32_0 = arith.constant 0 : i32
    %c0_i32_1 = arith.constant 0 : i32
    return %c0_i32, %c0_i32_0 : i32, i32
  }
  func.func @transform_2(%arg0: i32) -> (i32, i32) {
    %c0_i32 = arith.constant 0 : i32
    %c0_i32_0 = arith.constant 0 : i32
    %c0_i32_1 = arith.constant 0 : i32
    return %c0_i32, %c0_i32_0 : i32, i32
  }
  func.func @transform_3(%arg0: i32) -> (i32, i32) {
    %c0_i32 = arith.constant 0 : i32
    %c0_i32_0 = arith.constant 0 : i32
    %c0_i32_1 = arith.constant 0 : i32
    return %c0_i32, %c0_i32_0 : i32, i32
  }
  func.func @transform_4(%arg0: i32) -> (i32, i32) {
    %c0_i32 = arith.constant 0 : i32
    %c0_i32_0 = arith.constant 0 : i32
    %c0_i32_1 = arith.constant 0 : i32
    return %c0_i32, %c0_i32_0 : i32, i32
  }
  func.func @transform_5(%arg0: i32) -> (i32, i32) {
    %c0_i32 = arith.constant 0 : i32
    %c0_i32_0 = arith.constant 0 : i32
    return %arg0, %c0_i32 : i32, i32
  }
}

</mosaic_0001>

<llo_original>
// kernel: tpu_custom_call.1
$region0: #{tpu_custom_call.1}
  #allocation0 [shape = 'u32[]', space=smem, size = 0x4, offset = 0x4, fixed_abs, tag = 'smem constant byte address 0x4 - core index']
  #allocation1 [shape = 'u32[144,128]{1,0:T(1,128)}', space=vmem, size = 0x12000, scoped, tag = 'internal scratch']
  %s0 = inlined_call_operand.hbm [shape: bf16[512,128], index: 0, kind: input, shape index: {}]
  %s1 = inlined_call_operand.hbm [shape: bf16[128,128], index: 1, kind: input, shape index: {}]
  %s2 = inlined_call_operand.vmem [shape: f32[1,128], index: 2, kind: input, shape index: {}]
  %s3 = inlined_call_operand.vmem [shape: f32[1,128], index: 3, kind: input, shape index: {}]
  %s4 = inlined_call_operand.vmem [shape: f32[1,128], index: 4, kind: input, shape index: {}]
  %s5 = inlined_call_operand.hbm [shape: bf16[512,128], index: 5, kind: output, shape index: {}]
  %s6 = sld [smem:[#allocation0]]
  $region38: #{tpu_custom_call.1} parent=0
    _
  %s8 = ssub.s32 1, %s6
  %s9 = scalar_select 0, %s8, %s6
  $region1: #{tpu_custom_call.1} parent=0
    #allocation2 [shape = 'u8[131072]{0}', space=vmem, size = 0x20000, scoped, tag = 'input window, operand 0, single buffered']
    #allocation3 [shape = 's32[1]{0}', space=sflag, size = 0x4, scoped, tag = 'scoped memory for tpu_custom_call.1']
    #allocation4 [shape = 's32[1]{0}', space=sflag, size = 0x4, scoped, tag = 'scoped memory for tpu_custom_call.1']
    #allocation5 [shape = 'u8[32768]{0}', space=vmem, size = 0x8000, scoped, tag = 'input window, operand 1, single buffered']
    #allocation6 [shape = 's32[1]{0}', space=sflag, size = 0x4, scoped, tag = 'scoped memory for tpu_custom_call.1']
    #allocation7 [shape = 'u8[131072]{0}', space=vmem, size = 0x20000, scoped, tag = 'output window, operand 0, single buffered']
    %10 = vsyncpa [#allocation3], 0
    %11 = vsyncpa [#allocation6], 0
    %12 = vsyncpa [#allocation4], 0
    // Predicated region
    $region2: #{tpu_custom_call.1} parent=1 // pred_check
      _
    $region3: #{tpu_custom_call.1} parent=1 // pred_check_branch
      %14 = sbr.rel (0) target = $region5
    $region4: #{tpu_custom_call.1} parent=1 // pred_region
      %s16 = ssub.s32 4096, 4096
      %17 = vsyncadd [#allocation3], %s16
      %s18 = sshll.u32 [#allocation2], 4
      %s19 = int_to_ptr.vmem [resolvable:$true] %s18
      %24 = dma.hbm_to_vmem [thread:$0]  %s0, 4096, %s19, [#allocation3], 64, 64, 4
    $region5: #{tpu_custom_call.1} parent=1 // pred_fallthru
      _
    // Predicated region
    $region6: #{tpu_custom_call.1} parent=1 // pred_check
      _
    $region7: #{tpu_custom_call.1} parent=1 // pred_check_branch
      %26 = sbr.rel (0) target = $region9
    $region8: #{tpu_custom_call.1} parent=1 // pred_region
      %s28 = ssub.s32 1024, 1024
      %29 = vsyncadd [#allocation6], %s28
      %s30 = sshll.u32 [#allocation5], 4
      %s31 = int_to_ptr.vmem [resolvable:$true] %s30
      %36 = dma.hbm_to_vmem [thread:$0]  %s1, 1024, %s31, [#allocation6], 64, 64, 4
    $region9: #{tpu_custom_call.1} parent=1 // pred_fallthru
      _
    // Predicated region
    $region10: #{tpu_custom_call.1} parent=1 // pred_check
      _
    $region11: #{tpu_custom_call.1} parent=1 // pred_check_branch
      %38 = sbr.rel (0) target = $region13
    $region12: #{tpu_custom_call.1} parent=1 // pred_region
      _
    $region13: #{tpu_custom_call.1} parent=1 // pred_fallthru
      _
    // Predicated region
    $region14: #{tpu_custom_call.1} parent=1 // pred_check
      _
    $region15: #{tpu_custom_call.1} parent=1 // pred_check_branch
      %40 = sbr.rel (0) target = $region17
    $region16: #{tpu_custom_call.1} parent=1 // pred_region
      _
    $region17: #{tpu_custom_call.1} parent=1 // pred_fallthru
      _
    // Predicated region
    $region18: #{tpu_custom_call.1} parent=1 // pred_check
      _
    $region19: #{tpu_custom_call.1} parent=1 // pred_check_branch
      %42 = sbr.rel (0) target = $region21
    $region20: #{tpu_custom_call.1} parent=1 // pred_region
      _
    $region21: #{tpu_custom_call.1} parent=1 // pred_fallthru
      _
    // Predicated region
    $region22: #{tpu_custom_call.1} parent=1 // pred_check
      _
    $region23: #{tpu_custom_call.1} parent=1 // pred_check_branch
      %44 = sbr.rel (0) target = $region25
    $region24: #{tpu_custom_call.1} parent=1 // pred_region
      %45 = dma.done [#allocation3], 4096
    $region25: #{tpu_custom_call.1} parent=1 // pred_fallthru
      _
    // Predicated region
    $region26: #{tpu_custom_call.1} parent=1 // pred_check
      _
    $region27: #{tpu_custom_call.1} parent=1 // pred_check_branch
      %47 = sbr.rel (0) target = $region29
    $region28: #{tpu_custom_call.1} parent=1 // pred_region
      %48 = dma.done [#allocation6], 1024
    $region29: #{tpu_custom_call.1} parent=1 // pred_fallthru
      _
    %v50 = vld [vmem:[#allocation2] sm:$0xf]
    %v51 = vld [vmem:[#allocation2 + $0x4] sm:$0xf]
    %v52 = vld [vmem:[#allocation2 + $0x8] sm:$0xf]
    %v53 = vld [vmem:[#allocation2 + $0xc] sm:$0xf]
    %v54 = vld [vmem:[#allocation2 + $0x10] sm:$0xf]
    %v55 = vld [vmem:[#allocation2 + $0x14] sm:$0xf]
    %v56 = vld [vmem:[#allocation2 + $0x18] sm:$0xf]
    %v57 = vld [vmem:[#allocation2 + $0x1c] sm:$0xf]
    %v58 = vld [vmem:[#allocation2 + $0x20] sm:$0xf]
    %v59 = vld [vmem:[#allocation2 + $0x24] sm:$0xf]
    %v60 = vld [vmem:[#allocation2 + $0x28] sm:$0xf]
    %v61 = vld [vmem:[#allocation2 + $0x2c] sm:$0xf]
    %v62 = vld [vmem:[#allocation2 + $0x30] sm:$0xf]
    %v63 = vld [vmem:[#allocation2 + $0x34] sm:$0xf]
    %v64 = vld [vmem:[#allocation2 + $0x38] sm:$0xf]
    %v65 = vld [vmem:[#allocation2 + $0x3c] sm:$0xf]
    %v66 = vld [vmem:[#allocation2 + $0x40] sm:$0xf]
    %v67 = vld [vmem:[#allocation2 + $0x44] sm:$0xf]
    %v68 = vld [vmem:[#allocation2 + $0x48] sm:$0xf]
    %v69 = vld [vmem:[#allocation2 + $0x4c] sm:$0xf]
    %v70 = vld [vmem:[#allocation2 + $0x50] sm:$0xf]
    %v71 = vld [vmem:[#allocation2 + $0x54] sm:$0xf]
    %v72 = vld [vmem:[#allocation2 + $0x58] sm:$0xf]
    %v73 = vld [vmem:[#allocation2 + $0x5c] sm:$0xf]
    %v74 = vld [vmem:[#allocation2 + $0x60] sm:$0xf]
    %v75 = vld [vmem:[#allocation2 + $0x64] sm:$0xf]
    %v76 = vld [vmem:[#allocation2 + $0x68] sm:$0xf]
    %v77 = vld [vmem:[#allocation2 + $0x6c] sm:$0xf]
    %v78 = vld [vmem:[#allocation2 + $0x70] sm:$0xf]
    %v79 = vld [vmem:[#allocation2 + $0x74] sm:$0xf]
    %v80 = vld [vmem:[#allocation2 + $0x78] sm:$0xf]
    %v81 = vld [vmem:[#allocation2 + $0x7c] sm:$0xf]
    %v82 = vld [vmem:[#allocation2 + $0x80] sm:$0xf]
    %v83 = vld [vmem:[#allocation2 + $0x84] sm:$0xf]
    %v84 = vld [vmem:[#allocation2 + $0x88] sm:$0xf]
    %v85 = vld [vmem:[#allocation2 + $0x8c] sm:$0xf]
    %v86 = vld [vmem:[#allocation2 + $0x90] sm:$0xf]
    %v87 = vld [vmem:[#allocation2 + $0x94] sm:$0xf]
    %v88 = vld [vmem:[#allocation2 + $0x98] sm:$0xf]
    %v89 = vld [vmem:[#allocation2 + $0x9c] sm:$0xf]
    %v90 = vld [vmem:[#allocation2 + $0xa0] sm:$0xf]
    %v91 = vld [vmem:[#allocation2 + $0xa4] sm:$0xf]
    %v92 = vld [vmem:[#allocation2 + $0xa8] sm:$0xf]
    %v93 = vld [vmem:[#allocation2 + $0xac] sm:$0xf]
    %v94 = vld [vmem:[#allocation2 + $0xb0] sm:$0xf]
    %v95 = vld [vmem:[#allocation2 + $0xb4] sm:$0xf]
    %v96 = vld [vmem:[#allocation2 + $0xb8] sm:$0xf]
    %v97 = vld [vmem:[#allocation2 + $0xbc] sm:$0xf]
    %v98 = vld [vmem:[#allocation2 + $0xc0] sm:$0xf]
    %v99 = vld [vmem:[#allocation2 + $0xc4] sm:$0xf]
    %v100 = vld [vmem:[#allocation2 + $0xc8] sm:$0xf]
    %v101 = vld [vmem:[#allocation2 + $0xcc] sm:$0xf]
    %v102 = vld [vmem:[#allocation2 + $0xd0] sm:$0xf]
    %v103 = vld [vmem:[#allocation2 + $0xd4] sm:$0xf]
    %v104 = vld [vmem:[#allocation2 + $0xd8] sm:$0xf]
    %v105 = vld [vmem:[#allocation2 + $0xdc] sm:$0xf]
    %v106 = vld [vmem:[#allocation2 + $0xe0] sm:$0xf]
    %v107 = vld [vmem:[#allocation2 + $0xe4] sm:$0xf]
    %v108 = vld [vmem:[#allocation2 + $0xe8] sm:$0xf]
    %v109 = vld [vmem:[#allocation2 + $0xec] sm:$0xf]
    %v110 = vld [vmem:[#allocation2 + $0xf0] sm:$0xf]
    %v111 = vld [vmem:[#allocation2 + $0xf4] sm:$0xf]
    %v112 = vld [vmem:[#allocation2 + $0xf8] sm:$0xf]
    %v113 = vld [vmem:[#allocation2 + $0xfc] sm:$0xf]
    %v114 = vld [vmem:[#allocation5] sm:$0xf]
    %v115 = vld [vmem:[#allocation5 + $0x4] sm:$0xf]
    %v116 = vld [vmem:[#allocation5 + $0x8] sm:$0xf]
    %v117 = vld [vmem:[#allocation5 + $0xc] sm:$0xf]
    %v118 = vld [vmem:[#allocation5 + $0x10] sm:$0xf]
    %v119 = vld [vmem:[#allocation5 + $0x14] sm:$0xf]
    %v120 = vld [vmem:[#allocation5 + $0x18] sm:$0xf]
    %v121 = vld [vmem:[#allocation5 + $0x1c] sm:$0xf]
    %v122 = vld [vmem:[#allocation5 + $0x20] sm:$0xf]
    %v123 = vld [vmem:[#allocation5 + $0x24] sm:$0xf]
    %v124 = vld [vmem:[#allocation5 + $0x28] sm:$0xf]
    %v125 = vld [vmem:[#allocation5 + $0x2c] sm:$0xf]
    %v126 = vld [vmem:[#allocation5 + $0x30] sm:$0xf]
    %v127 = vld [vmem:[#allocation5 + $0x34] sm:$0xf]
    %v128 = vld [vmem:[#allocation5 + $0x38] sm:$0xf]
    %v129 = vld [vmem:[#allocation5 + $0x3c] sm:$0xf]
    %v130 = vld [vmem:[%s2] sm:$0x1]
    %v132 = vlaneseq
    %v133 = vshrl.u32 %v132, 7
    %v134 = vsub.s32 0, %v133
    %v135 = vrot.slane %v130, %v134
    %v201 = vunpack.c.l.b16 %v50
    %v202 = vunpack.c.l.b16 %v51
    %v203 = vunpack.c.l.b16 %v52
    %v204 = vunpack.c.l.b16 %v53
    %v205 = vunpack.c.l.b16 %v54
    %v206 = vunpack.c.l.b16 %v55
    %v207 = vunpack.c.l.b16 %v56
    %v208 = vunpack.c.l.b16 %v57
    %v209 = vunpack.c.l.b16 %v58
    %v210 = vunpack.c.l.b16 %v59
    %v211 = vunpack.c.l.b16 %v60
    %v212 = vunpack.c.l.b16 %v61
    %v213 = vunpack.c.l.b16 %v62
    %v214 = vunpack.c.l.b16 %v63
    %v215 = vunpack.c.l.b16 %v64
    %v216 = vunpack.c.l.b16 %v65
    %v217 = vunpack.c.l.b16 %v66
    %v218 = vunpack.c.l.b16 %v67
    %v219 = vunpack.c.l.b16 %v68
    %v220 = vunpack.c.l.b16 %v69
    %v221 = vunpack.c.l.b16 %v70
    %v222 = vunpack.c.l.b16 %v71
    %v223 = vunpack.c.l.b16 %v72
    %v224 = vunpack.c.l.b16 %v73
    %v225 = vunpack.c.l.b16 %v74
    %v226 = vunpack.c.l.b16 %v75
    %v227 = vunpack.c.l.b16 %v76
    %v228 = vunpack.c.l.b16 %v77
    %v229 = vunpack.c.l.b16 %v78
    %v230 = vunpack.c.l.b16 %v79
    %v231 = vunpack.c.l.b16 %v80
    %v232 = vunpack.c.l.b16 %v81
    %v233 = vunpack.c.l.b16 %v82
    %v234 = vunpack.c.l.b16 %v83
    %v235 = vunpack.c.l.b16 %v84
    %v236 = vunpack.c.l.b16 %v85
    %v237 = vunpack.c.l.b16 %v86
    %v238 = vunpack.c.l.b16 %v87
    %v239 = vunpack.c.l.b16 %v88
    %v240 = vunpack.c.l.b16 %v89
    %v241 = vunpack.c.l.b16 %v90
    %v242 = vunpack.c.l.b16 %v91
    %v243 = vunpack.c.l.b16 %v92
    %v244 = vunpack.c.l.b16 %v93
    %v245 = vunpack.c.l.b16 %v94
    %v246 = vunpack.c.l.b16 %v95
    %v247 = vunpack.c.l.b16 %v96
    %v248 = vunpack.c.l.b16 %v97
    %v249 = vunpack.c.l.b16 %v98
    %v250 = vunpack.c.l.b16 %v99
    %v251 = vunpack.c.l.b16 %v100
    %v252 = vunpack.c.l.b16 %v101
    %v253 = vunpack.c.l.b16 %v102
    %v254 = vunpack.c.l.b16 %v103
    %v255 = vunpack.c.l.b16 %v104
    %v256 = vunpack.c.l.b16 %v105
    %v257 = vunpack.c.l.b16 %v106
    %v258 = vunpack.c.l.b16 %v107
    %v259 = vunpack.c.l.b16 %v108
    %v260 = vunpack.c.l.b16 %v109
    %v261 = vunpack.c.l.b16 %v110
    %v262 = vunpack.c.l.b16 %v111
    %v263 = vunpack.c.l.b16 %v112
    %v264 = vunpack.c.l.b16 %v113
    %v265 = vpack.c.b16 %v202, %v201
    %v266 = vpack.c.b16 %v204, %v203
    %v267 = vpack.c.b16 %v206, %v205
    %v268 = vpack.c.b16 %v208, %v207
    %v269 = vpack.c.b16 %v210, %v209
    %v270 = vpack.c.b16 %v212, %v211
    %v271 = vpack.c.b16 %v214, %v213
    %v272 = vpack.c.b16 %v216, %v215
    %v273 = vpack.c.b16 %v218, %v217
    %v274 = vpack.c.b16 %v220, %v219
    %v275 = vpack.c.b16 %v222, %v221
    %v276 = vpack.c.b16 %v224, %v223
    %v277 = vpack.c.b16 %v226, %v225
    %v278 = vpack.c.b16 %v228, %v227
    %v279 = vpack.c.b16 %v230, %v229
    %v280 = vpack.c.b16 %v232, %v231
    %v281 = vpack.c.b16 %v234, %v233
    %v282 = vpack.c.b16 %v236, %v235
    %v283 = vpack.c.b16 %v238, %v237
    %v284 = vpack.c.b16 %v240, %v239
    %v285 = vpack.c.b16 %v242, %v241
    %v286 = vpack.c.b16 %v244, %v243
    %v287 = vpack.c.b16 %v246, %v245
    %v288 = vpack.c.b16 %v248, %v247
    %v289 = vpack.c.b16 %v250, %v249
    %v290 = vpack.c.b16 %v252, %v251
    %v291 = vpack.c.b16 %v254, %v253
    %v292 = vpack.c.b16 %v256, %v255
    %v293 = vpack.c.b16 %v258, %v257
    %v294 = vpack.c.b16 %v260, %v259
    %v295 = vpack.c.b16 %v262, %v261
    %v296 = vpack.c.b16 %v264, %v263
    %v345 = vunpack.c.l.b16 %v114
    %v346 = vunpack.c.l.b16 %v115
    %v347 = vunpack.c.l.b16 %v116
    %v348 = vunpack.c.l.b16 %v117
    %v349 = vunpack.c.l.b16 %v118
    %v350 = vunpack.c.l.b16 %v119
    %v351 = vunpack.c.l.b16 %v120
    %v352 = vunpack.c.l.b16 %v121
    %v353 = vunpack.c.l.b16 %v122
    %v354 = vunpack.c.l.b16 %v123
    %v355 = vunpack.c.l.b16 %v124
    %v356 = vunpack.c.l.b16 %v125
    %v357 = vunpack.c.l.b16 %v126
    %v358 = vunpack.c.l.b16 %v127
    %v359 = vunpack.c.l.b16 %v128
    %v360 = vunpack.c.l.b16 %v129
    %v361 = vpack.c.b16 %v346, %v345
    %v362 = vpack.c.b16 %v348, %v347
    %v363 = vpack.c.b16 %v350, %v349
    %v364 = vpack.c.b16 %v352, %v351
    %v365 = vpack.c.b16 %v354, %v353
    %v366 = vpack.c.b16 %v356, %v355
    %v367 = vpack.c.b16 %v358, %v357
    %v368 = vpack.c.b16 %v360, %v359
    %377 = vmatprep.subr.bf16.mxu0 0
    %378 = vmatpush1.bf16.msra.mxu0 %v368
    %379 = vmatprep.subr.bf16.mxu0 0
    %380 = vmatpush1.bf16.msra.mxu0 %v367
    %381 = vmatprep.subr.bf16.mxu0 0
    %382 = vmatpush1.bf16.msra.mxu0 %v366
    %383 = vmatprep.subr.bf16.mxu0 0
    %384 = vmatpush1.bf16.msra.mxu0 %v365
    %385 = vmatprep.subr.bf16.mxu0 0
    %386 = vmatpush1.bf16.msra.mxu0 %v364
    %387 = vmatprep.subr.bf16.mxu0 0
    %388 = vmatpush1.bf16.msra.mxu0 %v363
    %389 = vmatprep.subr.bf16.mxu0 0
    %390 = vmatpush1.bf16.msra.mxu0 %v362
    %391 = vmatprep.subr.bf16.mxu0 0
    %392 = vmatpush1.bf16.msra.mxu0 %v361
    %393 = vmatprep.subr.bf16.mxu0 0
    %394 = vmatpush2.bf16.msra.mxu0 0
    %395 = vmatprep.subr.bf16.mxu0 0
    %396 = vmatpush2.bf16.msra.mxu0 0
    %397 = vmatprep.subr.bf16.mxu0 0
    %398 = vmatpush2.bf16.msra.mxu0 0
    %399 = vmatprep.subr.bf16.mxu0 0
    %400 = vmatpush2.bf16.msra.mxu0 0
    %401 = vmatprep.subr.bf16.mxu0 0
    %402 = vmatpush2.bf16.msra.mxu0 0
    %403 = vmatprep.subr.bf16.mxu0 0
    %404 = vmatpush2.bf16.msra.mxu0 0
    %405 = vmatprep.subr.bf16.mxu0 0
    %406 = vmatpush2.bf16.msra.mxu0 0
    %407 = vmatprep.subr.bf16.mxu0 0
    %408 = vmatpush2.bf16.msra.mxu0 0
    %409 = vmatprep.mubr.bf16.mxu0 0
    %410 = vmatmul.mubr.bf16.gmra.mxu0 %v265
    %v411 = vpop.f32.mrf.mxu0
    %v412 = vadd.f32 %v135, %v411
    %v413 = vpop.f32.mrf.mxu0
    %v414 = vpop.f32.mrf.mxu0
    %v415 = vadd.f32 %v135, %v414
    %v416 = vpop.f32.mrf.mxu0
    %417 = vmatprep.mubr.bf16.mxu0 0
    %418 = vmatmul.mubr.bf16.gmra.mxu0 %v266
    %v419 = vpop.f32.mrf.mxu0
    %v420 = vadd.f32 %v135, %v419
    %v421 = vpop.f32.mrf.mxu0
    %v422 = vpop.f32.mrf.mxu0
    %v423 = vadd.f32 %v135, %v422
    %v424 = vpop.f32.mrf.mxu0
    %425 = vmatprep.mubr.bf16.mxu0 0
    %426 = vmatmul.mubr.bf16.gmra.mxu0 %v267
    %v427 = vpop.f32.mrf.mxu0
    %v428 = vadd.f32 %v135, %v427
    %v429 = vpop.f32.mrf.mxu0
    %v430 = vpop.f32.mrf.mxu0
    %v431 = vadd.f32 %v135, %v430
    %v432 = vpop.f32.mrf.mxu0
    %433 = vmatprep.mubr.bf16.mxu0 0
    %434 = vmatmul.mubr.bf16.gmra.mxu0 %v268
    %v435 = vpop.f32.mrf.mxu0
    %v436 = vadd.f32 %v135, %v435
    %v437 = vpop.f32.mrf.mxu0
    %v438 = vpop.f32.mrf.mxu0
    %v439 = vadd.f32 %v135, %v438
    %v440 = vpop.f32.mrf.mxu0
    %441 = vmatprep.mubr.bf16.mxu0 0
    %442 = vmatmul.mubr.bf16.gmra.mxu0 %v269
    %v443 = vpop.f32.mrf.mxu0
    %v444 = vadd.f32 %v135, %v443
    %v445 = vpop.f32.mrf.mxu0
    %v446 = vpop.f32.mrf.mxu0
    %v447 = vadd.f32 %v135, %v446
    %v448 = vpop.f32.mrf.mxu0
    %449 = vmatprep.mubr.bf16.mxu0 0
    %450 = vmatmul.mubr.bf16.gmra.mxu0 %v270
    %v451 = vpop.f32.mrf.mxu0
    %v452 = vadd.f32 %v135, %v451
    %v453 = vpop.f32.mrf.mxu0
    %v454 = vpop.f32.mrf.mxu0
    %v455 = vadd.f32 %v135, %v454
    %v456 = vpop.f32.mrf.mxu0
    %457 = vmatprep.mubr.bf16.mxu0 0
    %458 = vmatmul.mubr.bf16.gmra.mxu0 %v271
    %v459 = vpop.f32.mrf.mxu0
    %v460 = vadd.f32 %v135, %v459
    %v461 = vpop.f32.mrf.mxu0
    %v462 = vpop.f32.mrf.mxu0
    %v463 = vadd.f32 %v135, %v462
    %v464 = vpop.f32.mrf.mxu0
    %465 = vmatprep.mubr.bf16.mxu0 0
    %466 = vmatmul.mubr.bf16.gmra.mxu0 %v272
    %v467 = vpop.f32.mrf.mxu0
    %v468 = vadd.f32 %v135, %v467
    %v469 = vpop.f32.mrf.mxu0
    %v470 = vpop.f32.mrf.mxu0
    %v471 = vadd.f32 %v135, %v470
    %v472 = vpop.f32.mrf.mxu0
    %473 = vmatprep.mubr.bf16.mxu0 0
    %474 = vmatmul.mubr.bf16.gmra.mxu0 %v273
    %v475 = vpop.f32.mrf.mxu0
    %v476 = vadd.f32 %v135, %v475
    %v477 = vpop.f32.mrf.mxu0
    %v478 = vpop.f32.mrf.mxu0
    %v479 = vadd.f32 %v135, %v478
    %v480 = vpop.f32.mrf.mxu0
    %481 = vmatprep.mubr.bf16.mxu0 0
    %482 = vmatmul.mubr.bf16.gmra.mxu0 %v274
    %v483 = vpop.f32.mrf.mxu0
    %v484 = vadd.f32 %v135, %v483
    %v485 = vpop.f32.mrf.mxu0
    %v486 = vpop.f32.mrf.mxu0
    %v487 = vadd.f32 %v135, %v486
    %v488 = vpop.f32.mrf.mxu0
    %489 = vmatprep.mubr.bf16.mxu0 0
    %490 = vmatmul.mubr.bf16.gmra.mxu0 %v275
    %v491 = vpop.f32.mrf.mxu0
    %v492 = vadd.f32 %v135, %v491
    %v493 = vpop.f32.mrf.mxu0
    %v494 = vpop.f32.mrf.mxu0
    %v495 = vadd.f32 %v135, %v494
    %v496 = vpop.f32.mrf.mxu0
    %497 = vmatprep.mubr.bf16.mxu0 0
    %498 = vmatmul.mubr.bf16.gmra.mxu0 %v276
    %v499 = vpop.f32.mrf.mxu0
    %v500 = vadd.f32 %v135, %v499
    %v501 = vpop.f32.mrf.mxu0
    %v502 = vpop.f32.mrf.mxu0
    %v503 = vadd.f32 %v135, %v502
    %v504 = vpop.f32.mrf.mxu0
    %505 = vmatprep.mubr.bf16.mxu0 0
    %506 = vmatmul.mubr.bf16.gmra.mxu0 %v277
    %v507 = vpop.f32.mrf.mxu0
    %v508 = vadd.f32 %v135, %v507
    %v509 = vpop.f32.mrf.mxu0
    %v510 = vpop.f32.mrf.mxu0
    %v511 = vadd.f32 %v135, %v510
    %v512 = vpop.f32.mrf.mxu0
    %513 = vmatprep.mubr.bf16.mxu0 0
    %514 = vmatmul.mubr.bf16.gmra.mxu0 %v278
    %v515 = vpop.f32.mrf.mxu0
    %v516 = vadd.f32 %v135, %v515
    %v517 = vpop.f32.mrf.mxu0
    %v518 = vpop.f32.mrf.mxu0
    %v519 = vadd.f32 %v135, %v518
    %v520 = vpop.f32.mrf.mxu0
    %521 = vmatprep.mubr.bf16.mxu0 0
    %522 = vmatmul.mubr.bf16.gmra.mxu0 %v279
    %v523 = vpop.f32.mrf.mxu0
    %v524 = vadd.f32 %v135, %v523
    %v525 = vpop.f32.mrf.mxu0
    %v526 = vpop.f32.mrf.mxu0
    %v527 = vadd.f32 %v135, %v526
    %v528 = vpop.f32.mrf.mxu0
    %529 = vmatprep.mubr.bf16.mxu0 0
    %530 = vmatmul.mubr.bf16.gmra.mxu0 %v280
    %v531 = vpop.f32.mrf.mxu0
    %v532 = vadd.f32 %v135, %v531
    %v533 = vpop.f32.mrf.mxu0
    %v534 = vpop.f32.mrf.mxu0
    %v535 = vadd.f32 %v135, %v534
    %v536 = vpop.f32.mrf.mxu0
    %537 = vmatprep.mubr.bf16.mxu0 0
    %538 = vmatmul.mubr.bf16.gmra.mxu0 %v281
    %v539 = vpop.f32.mrf.mxu0
    %v540 = vadd.f32 %v135, %v539
    %v541 = vpop.f32.mrf.mxu0
    %v542 = vpop.f32.mrf.mxu0
    %v543 = vadd.f32 %v135, %v542
    %v544 = vpop.f32.mrf.mxu0
    %545 = vmatprep.mubr.bf16.mxu0 0
    %546 = vmatmul.mubr.bf16.gmra.mxu0 %v282
    %v547 = vpop.f32.mrf.mxu0
    %v548 = vadd.f32 %v135, %v547
    %v549 = vpop.f32.mrf.mxu0
    %v550 = vpop.f32.mrf.mxu0
    %v551 = vadd.f32 %v135, %v550
    %v552 = vpop.f32.mrf.mxu0
    %553 = vmatprep.mubr.bf16.mxu0 0
    %554 = vmatmul.mubr.bf16.gmra.mxu0 %v283
    %v555 = vpop.f32.mrf.mxu0
    %v556 = vadd.f32 %v135, %v555
    %v557 = vpop.f32.mrf.mxu0
    %v558 = vpop.f32.mrf.mxu0
    %v559 = vadd.f32 %v135, %v558
    %v560 = vpop.f32.mrf.mxu0
    %561 = vmatprep.mubr.bf16.mxu0 0
    %562 = vmatmul.mubr.bf16.gmra.mxu0 %v284
    %v563 = vpop.f32.mrf.mxu0
    %v564 = vadd.f32 %v135, %v563
    %v565 = vpop.f32.mrf.mxu0
    %v566 = vpop.f32.mrf.mxu0
    %v567 = vadd.f32 %v135, %v566
    %v568 = vpop.f32.mrf.mxu0
    %569 = vmatprep.mubr.bf16.mxu0 0
    %570 = vmatmul.mubr.bf16.gmra.mxu0 %v285
    %v571 = vpop.f32.mrf.mxu0
    %v572 = vadd.f32 %v135, %v571
    %v573 = vpop.f32.mrf.mxu0
    %v574 = vpop.f32.mrf.mxu0
    %v575 = vadd.f32 %v135, %v574
    %v576 = vpop.f32.mrf.mxu0
    %577 = vmatprep.mubr.bf16.mxu0 0
    %578 = vmatmul.mubr.bf16.gmra.mxu0 %v286
    %v579 = vpop.f32.mrf.mxu0
    %v580 = vadd.f32 %v135, %v579
    %v581 = vpop.f32.mrf.mxu0
    %v582 = vpop.f32.mrf.mxu0
    %v583 = vadd.f32 %v135, %v582
    %v584 = vpop.f32.mrf.mxu0
    %585 = vmatprep.mubr.bf16.mxu0 0
    %586 = vmatmul.mubr.bf16.gmra.mxu0 %v287
    %v587 = vpop.f32.mrf.mxu0
    %v588 = vadd.f32 %v135, %v587
    %v589 = vpop.f32.mrf.mxu0
    %v590 = vpop.f32.mrf.mxu0
    %v591 = vadd.f32 %v135, %v590
    %v592 = vpop.f32.mrf.mxu0
    %593 = vmatprep.mubr.bf16.mxu0 0
    %594 = vmatmul.mubr.bf16.gmra.mxu0 %v288
    %v595 = vpop.f32.mrf.mxu0
    %v596 = vadd.f32 %v135, %v595
    %v597 = vpop.f32.mrf.mxu0
    %v598 = vpop.f32.mrf.mxu0
    %v599 = vadd.f32 %v135, %v598
    %v600 = vpop.f32.mrf.mxu0
    %601 = vmatprep.mubr.bf16.mxu0 0
    %602 = vmatmul.mubr.bf16.gmra.mxu0 %v289
    %v603 = vpop.f32.mrf.mxu0
    %v604 = vadd.f32 %v135, %v603
    %v605 = vpop.f32.mrf.mxu0
    %v606 = vpop.f32.mrf.mxu0
    %v607 = vadd.f32 %v135, %v606
    %v608 = vpop.f32.mrf.mxu0
    %609 = vmatprep.mubr.bf16.mxu0 0
    %610 = vmatmul.mubr.bf16.gmra.mxu0 %v290
    %v611 = vpop.f32.mrf.mxu0
    %v612 = vadd.f32 %v135, %v611
    %v613 = vpop.f32.mrf.mxu0
    %v614 = vpop.f32.mrf.mxu0
    %v615 = vadd.f32 %v135, %v614
    %v616 = vpop.f32.mrf.mxu0
    %617 = vmatprep.mubr.bf16.mxu0 0
    %618 = vmatmul.mubr.bf16.gmra.mxu0 %v291
    %v619 = vpop.f32.mrf.mxu0
    %v620 = vadd.f32 %v135, %v619
    %v621 = vpop.f32.mrf.mxu0
    %v622 = vpop.f32.mrf.mxu0
    %v623 = vadd.f32 %v135, %v622
    %v624 = vpop.f32.mrf.mxu0
    %625 = vmatprep.mubr.bf16.mxu0 0
    %626 = vmatmul.mubr.bf16.gmra.mxu0 %v292
    %v627 = vpop.f32.mrf.mxu0
    %v628 = vadd.f32 %v135, %v627
    %v629 = vpop.f32.mrf.mxu0
    %v630 = vpop.f32.mrf.mxu0
    %v631 = vadd.f32 %v135, %v630
    %v632 = vpop.f32.mrf.mxu0
    %633 = vmatprep.mubr.bf16.mxu0 0
    %634 = vmatmul.mubr.bf16.gmra.mxu0 %v293
    %v635 = vpop.f32.mrf.mxu0
    %v636 = vadd.f32 %v135, %v635
    %v637 = vpop.f32.mrf.mxu0
    %v638 = vpop.f32.mrf.mxu0
    %v639 = vadd.f32 %v135, %v638
    %v640 = vpop.f32.mrf.mxu0
    %641 = vmatprep.mubr.bf16.mxu0 0
    %642 = vmatmul.mubr.bf16.gmra.mxu0 %v294
    %v643 = vpop.f32.mrf.mxu0
    %v644 = vadd.f32 %v135, %v643
    %v645 = vpop.f32.mrf.mxu0
    %v646 = vpop.f32.mrf.mxu0
    %v647 = vadd.f32 %v135, %v646
    %v648 = vpop.f32.mrf.mxu0
    %649 = vmatprep.mubr.bf16.mxu0 0
    %650 = vmatmul.mubr.bf16.gmra.mxu0 %v295
    %v651 = vpop.f32.mrf.mxu0
    %v652 = vadd.f32 %v135, %v651
    %v653 = vpop.f32.mrf.mxu0
    %v654 = vpop.f32.mrf.mxu0
    %v655 = vadd.f32 %v135, %v654
    %v656 = vpop.f32.mrf.mxu0
    %657 = vmatprep.mubr.bf16.mxu0 0
    %658 = vmatmul.mubr.bf16.gmra.mxu0 %v296
    %v659 = vpop.f32.mrf.mxu0
    %v660 = vadd.f32 %v135, %v659
    %v661 = vpop.f32.mrf.mxu0
    %v662 = vpop.f32.mrf.mxu0
    %v663 = vadd.f32 %v135, %v662
    %v664 = vpop.f32.mrf.mxu0
    %665 = vdwg.mxu0
    %s666 = smul.u32 0, 512
    %v667 = vlaneseq
    %v668 = vshrl.u32 %v667, 7
    %v669 = vadd.s32 %v668, 8
    %v670 = vadd.s32 %v668, 16
    %v671 = vadd.s32 %v668, 24
    %v672 = vadd.s32 %v668, 32
    %v673 = vadd.s32 %v668, 40
    %v674 = vadd.s32 %v668, 48
    %v675 = vadd.s32 %v668, 56
    %v676 = vadd.s32 %v668, 64
    %v677 = vadd.s32 %v668, 72
    %v678 = vadd.s32 %v668, 80
    %v679 = vadd.s32 %v668, 88
    %v680 = vadd.s32 %v668, 96
    %v681 = vadd.s32 %v668, 104
    %v682 = vadd.s32 %v668, 112
    %v683 = vadd.s32 %v668, 120
    %v684 = vadd.s32 %v668, 128
    %v685 = vadd.s32 %v668, 136
    %v686 = vadd.s32 %v668, 144
    %v687 = vadd.s32 %v668, 152
    %v688 = vadd.s32 %v668, 160
    %v689 = vadd.s32 %v668, 168
    %v690 = vadd.s32 %v668, 176
    %v691 = vadd.s32 %v668, 184
    %v692 = vadd.s32 %v668, 192
    %v693 = vadd.s32 %v668, 200
    %v694 = vadd.s32 %v668, 208
    %v695 = vadd.s32 %v668, 216
    %v696 = vadd.s32 %v668, 224
    %v697 = vadd.s32 %v668, 232
    %v698 = vadd.s32 %v668, 240
    %v699 = vadd.s32 %v668, 248
    %v700 = vadd.s32 %v668, 256
    %v701 = vadd.s32 %v668, 264
    %v702 = vadd.s32 %v668, 272
    %v703 = vadd.s32 %v668, 280
    %v704 = vadd.s32 %v668, 288
    %v705 = vadd.s32 %v668, 296
    %v706 = vadd.s32 %v668, 304
    %v707 = vadd.s32 %v668, 312
    %v708 = vadd.s32 %v668, 320
    %v709 = vadd.s32 %v668, 328
    %v710 = vadd.s32 %v668, 336
    %v711 = vadd.s32 %v668, 344
    %v712 = vadd.s32 %v668, 352
    %v713 = vadd.s32 %v668, 360
    %v714 = vadd.s32 %v668, 368
    %v715 = vadd.s32 %v668, 376
    %v716 = vadd.s32 %v668, 384
    %v717 = vadd.s32 %v668, 392
    %v718 = vadd.s32 %v668, 400
    %v719 = vadd.s32 %v668, 408
    %v720 = vadd.s32 %v668, 416
    %v721 = vadd.s32 %v668, 424
    %v722 = vadd.s32 %v668, 432
    %v723 = vadd.s32 %v668, 440
    %v724 = vadd.s32 %v668, 448
    %v725 = vadd.s32 %v668, 456
    %v726 = vadd.s32 %v668, 464
    %v727 = vadd.s32 %v668, 472
    %v728 = vadd.s32 %v668, 480
    %v729 = vadd.s32 %v668, 488
    %v730 = vadd.s32 %v668, 496
    %v731 = vadd.s32 %v668, 504
    %v732 = vstv %s666
    %v733 = vadd.s32 %v732, %v668
    %v734 = vadd.s32 %v732, %v669
    %v735 = vadd.s32 %v732, %v670
    %v736 = vadd.s32 %v732, %v671
    %v737 = vadd.s32 %v732, %v672
    %v738 = vadd.s32 %v732, %v673
    %v739 = vadd.s32 %v732, %v674
    %v740 = vadd.s32 %v732, %v675
    %v741 = vadd.s32 %v732, %v676
    %v742 = vadd.s32 %v732, %v677
    %v743 = vadd.s32 %v732, %v678
    %v744 = vadd.s32 %v732, %v679
    %v745 = vadd.s32 %v732, %v680
    %v746 = vadd.s32 %v732, %v681
    %v747 = vadd.s32 %v732, %v682
    %v748 = vadd.s32 %v732, %v683
    %v749 = vadd.s32 %v732, %v684
    %v750 = vadd.s32 %v732, %v685
    %v751 = vadd.s32 %v732, %v686
    %v752 = vadd.s32 %v732, %v687
    %v753 = vadd.s32 %v732, %v688
    %v754 = vadd.s32 %v732, %v689
    %v755 = vadd.s32 %v732, %v690
    %v756 = vadd.s32 %v732, %v691
    %v757 = vadd.s32 %v732, %v692
    %v758 = vadd.s32 %v732, %v693
    %v759 = vadd.s32 %v732, %v694
    %v760 = vadd.s32 %v732, %v695
    %v761 = vadd.s32 %v732, %v696
    %v762 = vadd.s32 %v732, %v697
    %v763 = vadd.s32 %v732, %v698
    %v764 = vadd.s32 %v732, %v699
    %v765 = vadd.s32 %v732, %v700
    %v766 = vadd.s32 %v732, %v701
    %v767 = vadd.s32 %v732, %v702
    %v768 = vadd.s32 %v732, %v703
    %v769 = vadd.s32 %v732, %v704
    %v770 = vadd.s32 %v732, %v705
    %v771 = vadd.s32 %v732, %v706
    %v772 = vadd.s32 %v732, %v707
    %v773 = vadd.s32 %v732, %v708
    %v774 = vadd.s32 %v732, %v709
    %v775 = vadd.s32 %v732, %v710
    %v776 = vadd.s32 %v732, %v711
    %v777 = vadd.s32 %v732, %v712
    %v778 = vadd.s32 %v732, %v713
    %v779 = vadd.s32 %v732, %v714
    %v780 = vadd.s32 %v732, %v715
    %v781 = vadd.s32 %v732, %v716
    %v782 = vadd.s32 %v732, %v717
    %v783 = vadd.s32 %v732, %v718
    %v784 = vadd.s32 %v732, %v719
    %v785 = vadd.s32 %v732, %v720
    %v786 = vadd.s32 %v732, %v721
    %v787 = vadd.s32 %v732, %v722
    %v788 = vadd.s32 %v732, %v723
    %v789 = vadd.s32 %v732, %v724
    %v790 = vadd.s32 %v732, %v725
    %v791 = vadd.s32 %v732, %v726
    %v792 = vadd.s32 %v732, %v727
    %v793 = vadd.s32 %v732, %v728
    %v794 = vadd.s32 %v732, %v729
    %v795 = vadd.s32 %v732, %v730
    %v796 = vadd.s32 %v732, %v731
    %vm797 = vcmp.lt.s32.totalorder %v733, 512
    %vm798 = vcmp.lt.s32.totalorder %v734, 512
    %vm799 = vcmp.lt.s32.totalorder %v735, 512
    %vm800 = vcmp.lt.s32.totalorder %v736, 512
    %vm801 = vcmp.lt.s32.totalorder %v737, 512
    %vm802 = vcmp.lt.s32.totalorder %v738, 512
    %vm803 = vcmp.lt.s32.totalorder %v739, 512
    %vm804 = vcmp.lt.s32.totalorder %v740, 512
    %vm805 = vcmp.lt.s32.totalorder %v741, 512
    %vm806 = vcmp.lt.s32.totalorder %v742, 512
    %vm807 = vcmp.lt.s32.totalorder %v743, 512
    %vm808 = vcmp.lt.s32.totalorder %v744, 512
    %vm809 = vcmp.lt.s32.totalorder %v745, 512
    %vm810 = vcmp.lt.s32.totalorder %v746, 512
    %vm811 = vcmp.lt.s32.totalorder %v747, 512
    %vm812 = vcmp.lt.s32.totalorder %v748, 512
    %vm813 = vcmp.lt.s32.totalorder %v749, 512
    %vm814 = vcmp.lt.s32.totalorder %v750, 512
    %vm815 = vcmp.lt.s32.totalorder %v751, 512
    %vm816 = vcmp.lt.s32.totalorder %v752, 512
    %vm817 = vcmp.lt.s32.totalorder %v753, 512
    %vm818 = vcmp.lt.s32.totalorder %v754, 512
    %vm819 = vcmp.lt.s32.totalorder %v755, 512
    %vm820 = vcmp.lt.s32.totalorder %v756, 512
    %vm821 = vcmp.lt.s32.totalorder %v757, 512
    %vm822 = vcmp.lt.s32.totalorder %v758, 512
    %vm823 = vcmp.lt.s32.totalorder %v759, 512
    %vm824 = vcmp.lt.s32.totalorder %v760, 512
    %vm825 = vcmp.lt.s32.totalorder %v761, 512
    %vm826 = vcmp.lt.s32.totalorder %v762, 512
    %vm827 = vcmp.lt.s32.totalorder %v763, 512
    %vm828 = vcmp.lt.s32.totalorder %v764, 512
    %vm829 = vcmp.lt.s32.totalorder %v765, 512
    %vm830 = vcmp.lt.s32.totalorder %v766, 512
    %vm831 = vcmp.lt.s32.totalorder %v767, 512
    %vm832 = vcmp.lt.s32.totalorder %v768, 512
    %vm833 = vcmp.lt.s32.totalorder %v769, 512
    %vm834 = vcmp.lt.s32.totalorder %v770, 512
    %vm835 = vcmp.lt.s32.totalorder %v771, 512
    %vm836 = vcmp.lt.s32.totalorder %v772, 512
    %vm837 = vcmp.lt.s32.totalorder %v773, 512
    %vm838 = vcmp.lt.s32.totalorder %v774, 512
    %vm839 = vcmp.lt.s32.totalorder %v775, 512
    %vm840 = vcmp.lt.s32.totalorder %v776, 512
    %vm841 = vcmp.lt.s32.totalorder %v777, 512
    %vm842 = vcmp.lt.s32.totalorder %v778, 512
    %vm843 = vcmp.lt.s32.totalorder %v779, 512
    %vm844 = vcmp.lt.s32.totalorder %v780, 512
    %vm845 = vcmp.lt.s32.totalorder %v781, 512
    %vm846 = vcmp.lt.s32.totalorder %v782, 512
    %vm847 = vcmp.lt.s32.totalorder %v783, 512
    %vm848 = vcmp.lt.s32.totalorder %v784, 512
    %vm849 = vcmp.lt.s32.totalorder %v785, 512
    %vm850 = vcmp.lt.s32.totalorder %v786, 512
    %vm851 = vcmp.lt.s32.totalorder %v787, 512
    %vm852 = vcmp.lt.s32.totalorder %v788, 512
    %vm853 = vcmp.lt.s32.totalorder %v789, 512
    %vm854 = vcmp.lt.s32.totalorder %v790, 512
    %vm855 = vcmp.lt.s32.totalorder %v791, 512
    %vm856 = vcmp.lt.s32.totalorder %v792, 512
    %vm857 = vcmp.lt.s32.totalorder %v793, 512
    %vm858 = vcmp.lt.s32.totalorder %v794, 512
    %vm859 = vcmp.lt.s32.totalorder %v795, 512
    %vm860 = vcmp.lt.s32.totalorder %v796, 512
    %v861 = vsel %vm797, %v412, 0.0
    %v862 = vsel %vm798, %v415, 0.0
    %v863 = vsel %vm799, %v420, 0.0
    %v864 = vsel %vm800, %v423, 0.0
    %v865 = vsel %vm801, %v428, 0.0
    %v866 = vsel %vm802, %v431, 0.0
    %v867 = vsel %vm803, %v436, 0.0
    %v868 = vsel %vm804, %v439, 0.0
    %v869 = vsel %vm805, %v444, 0.0
    %v870 = vsel %vm806, %v447, 0.0
    %v871 = vsel %vm807, %v452, 0.0
    %v872 = vsel %vm808, %v455, 0.0
    %v873 = vsel %vm809, %v460, 0.0
    %v874 = vsel %vm810, %v463, 0.0
    %v875 = vsel %vm811, %v468, 0.0
    %v876 = vsel %vm812, %v471, 0.0
    %v877 = vsel %vm813, %v476, 0.0
    %v878 = vsel %vm814, %v479, 0.0
    %v879 = vsel %vm815, %v484, 0.0
    %v880 = vsel %vm816, %v487, 0.0
    %v881 = vsel %vm817, %v492, 0.0
    %v882 = vsel %vm818, %v495, 0.0
    %v883 = vsel %vm819, %v500, 0.0
    %v884 = vsel %vm820, %v503, 0.0
    %v885 = vsel %vm821, %v508, 0.0
    %v886 = vsel %vm822, %v511, 0.0
    %v887 = vsel %vm823, %v516, 0.0
    %v888 = vsel %vm824, %v519, 0.0
    %v889 = vsel %vm825, %v524, 0.0
    %v890 = vsel %vm826, %v527, 0.0
    %v891 = vsel %vm827, %v532, 0.0
    %v892 = vsel %vm828, %v535, 0.0
    %v893 = vsel %vm829, %v540, 0.0
    %v894 = vsel %vm830, %v543, 0.0
    %v895 = vsel %vm831, %v548, 0.0
    %v896 = vsel %vm832, %v551, 0.0
    %v897 = vsel %vm833, %v556, 0.0
    %v898 = vsel %vm834, %v559, 0.0
    %v899 = vsel %vm835, %v564, 0.0
    %v900 = vsel %vm836, %v567, 0.0
    %v901 = vsel %vm837, %v572, 0.0
    %v902 = vsel %vm838, %v575, 0.0
    %v903 = vsel %vm839, %v580, 0.0
    %v904 = vsel %vm840, %v583, 0.0
    %v905 = vsel %vm841, %v588, 0.0
    %v906 = vsel %vm842, %v591, 0.0
    %v907 = vsel %vm843, %v596, 0.0
    %v908 = vsel %vm844, %v599, 0.0
    %v909 = vsel %vm845, %v604, 0.0
    %v910 = vsel %vm846, %v607, 0.0
    %v911 = vsel %vm847, %v612, 0.0
    %v912 = vsel %vm848, %v615, 0.0
    %v913 = vsel %vm849, %v620, 0.0
    %v914 = vsel %vm850, %v623, 0.0
    %v915 = vsel %vm851, %v628, 0.0
    %v916 = vsel %vm852, %v631, 0.0
    %v917 = vsel %vm853, %v636, 0.0
    %v918 = vsel %vm854, %v639, 0.0
    %v919 = vsel %vm855, %v644, 0.0
    %v920 = vsel %vm856, %v647, 0.0
    %v921 = vsel %vm857, %v652, 0.0
    %v922 = vsel %vm858, %v655, 0.0
    %v923 = vsel %vm859, %v660, 0.0
    %v924 = vsel %vm860, %v663, 0.0
    %v925 = vadd.f32 %v861, %v862
    %v926 = vadd.f32 %v925, %v863
    %v927 = vadd.f32 %v926, %v864
    %v928 = vadd.f32 %v927, %v865
    %v929 = vadd.f32 %v928, %v866
    %v930 = vadd.f32 %v929, %v867
    %v931 = vadd.f32 %v930, %v868
    %v932 = vadd.f32 %v931, %v869
    %v933 = vadd.f32 %v932, %v870
    %v934 = vadd.f32 %v933, %v871
    %v935 = vadd.f32 %v934, %v872
    %v936 = vadd.f32 %v935, %v873
    %v937 = vadd.f32 %v936, %v874
    %v938 = vadd.f32 %v937, %v875
    %v939 = vadd.f32 %v938, %v876
    %v940 = vadd.f32 %v939, %v877
    %v941 = vadd.f32 %v940, %v878
    %v942 = vadd.f32 %v941, %v879
    %v943 = vadd.f32 %v942, %v880
    %v944 = vadd.f32 %v943, %v881
    %v945 = vadd.f32 %v944, %v882
    %v946 = vadd.f32 %v945, %v883
    %v947 = vadd.f32 %v946, %v884
    %v948 = vadd.f32 %v947, %v885
    %v949 = vadd.f32 %v948, %v886
    %v950 = vadd.f32 %v949, %v887
    %v951 = vadd.f32 %v950, %v888
    %v952 = vadd.f32 %v951, %v889
    %v953 = vadd.f32 %v952, %v890
    %v954 = vadd.f32 %v953, %v891
    %v955 = vadd.f32 %v954, %v892
    %v956 = vadd.f32 %v955, %v893
    %v957 = vadd.f32 %v956, %v894
    %v958 = vadd.f32 %v957, %v895
    %v959 = vadd.f32 %v958, %v896
    %v960 = vadd.f32 %v959, %v897
    %v961 = vadd.f32 %v960, %v898
    %v962 = vadd.f32 %v961, %v899
    %v963 = vadd.f32 %v962, %v900
    %v964 = vadd.f32 %v963, %v901
    %v965 = vadd.f32 %v964, %v902
    %v966 = vadd.f32 %v965, %v903
    %v967 = vadd.f32 %v966, %v904
    %v968 = vadd.f32 %v967, %v905
    %v969 = vadd.f32 %v968, %v906
    %v970 = vadd.f32 %v969, %v907
    %v971 = vadd.f32 %v970, %v908
    %v972 = vadd.f32 %v971, %v909
    %v973 = vadd.f32 %v972, %v910
    %v974 = vadd.f32 %v973, %v911
    %v975 = vadd.f32 %v974, %v912
    %v976 = vadd.f32 %v975, %v913
    %v977 = vadd.f32 %v976, %v914
    %v978 = vadd.f32 %v977, %v915
    %v979 = vadd.f32 %v978, %v916
    %v980 = vadd.f32 %v979, %v917
    %v981 = vadd.f32 %v980, %v918
    %v982 = vadd.f32 %v981, %v919
    %v983 = vadd.f32 %v982, %v920
    %v984 = vadd.f32 %v983, %v921
    %v985 = vadd.f32 %v984, %v922
    %v986 = vadd.f32 %v985, %v923
    %v987 = vadd.f32 %v986, %v924
    %v988 = vrot.slane %v987, 4
    %v989 = vadd.f32 %v987, %v988
    %v990 = vrot.slane %v989, 2
    %v991 = vadd.f32 %v989, %v990
    %v992 = vrot.slane %v991, 1
    %v993 = vadd.f32 %v991, %v992
    %v994 = vmul.f32 %v993, 0.001953125
    %v995 = vsub.f32 %v412, %v994
    %v996 = vsub.f32 %v415, %v994
    %v997 = vsub.f32 %v420, %v994
    %v998 = vsub.f32 %v423, %v994
    %v999 = vsub.f32 %v428, %v994
    %v1000 = vsub.f32 %v431, %v994
    %v1001 = vsub.f32 %v436, %v994
    %v1002 = vsub.f32 %v439, %v994
    %v1003 = vsub.f32 %v444, %v994
    %v1004 = vsub.f32 %v447, %v994
    %v1005 = vsub.f32 %v452, %v994
    %v1006 = vsub.f32 %v455, %v994
    %v1007 = vsub.f32 %v460, %v994
    %v1008 = vsub.f32 %v463, %v994
    %v1009 = vsub.f32 %v468, %v994
    %v1010 = vsub.f32 %v471, %v994
    %v1011 = vsub.f32 %v476, %v994
    %v1012 = vsub.f32 %v479, %v994
    %v1013 = vsub.f32 %v484, %v994
    %v1014 = vsub.f32 %v487, %v994
    %v1015 = vsub.f32 %v492, %v994
    %v1016 = vsub.f32 %v495, %v994
    %v1017 = vsub.f32 %v500, %v994
    %v1018 = vsub.f32 %v503, %v994
    %v1019 = vsub.f32 %v508, %v994
    %v1020 = vsub.f32 %v511, %v994
    %v1021 = vsub.f32 %v516, %v994
    %v1022 = vsub.f32 %v519, %v994
    %v1023 = vsub.f32 %v524, %v994
    %v1024 = vsub.f32 %v527, %v994
    %v1025 = vsub.f32 %v532, %v994
    %v1026 = vsub.f32 %v535, %v994
    %v1027 = vsub.f32 %v540, %v994
    %v1028 = vsub.f32 %v543, %v994
    %v1029 = vsub.f32 %v548, %v994
    %v1030 = vsub.f32 %v551, %v994
    %v1031 = vsub.f32 %v556, %v994
    %v1032 = vsub.f32 %v559, %v994
    %v1033 = vsub.f32 %v564, %v994
    %v1034 = vsub.f32 %v567, %v994
    %v1035 = vsub.f32 %v572, %v994
    %v1036 = vsub.f32 %v575, %v994
    %v1037 = vsub.f32 %v580, %v994
    %v1038 = vsub.f32 %v583, %v994
    %v1039 = vsub.f32 %v588, %v994
    %v1040 = vsub.f32 %v591, %v994
    %v1041 = vsub.f32 %v596, %v994
    %v1042 = vsub.f32 %v599, %v994
    %v1043 = vsub.f32 %v604, %v994
    %v1044 = vsub.f32 %v607, %v994
    %v1045 = vsub.f32 %v612, %v994
    %v1046 = vsub.f32 %v615, %v994
    %v1047 = vsub.f32 %v620, %v994
    %v1048 = vsub.f32 %v623, %v994
    %v1049 = vsub.f32 %v628, %v994
    %v1050 = vsub.f32 %v631, %v994
    %v1051 = vsub.f32 %v636, %v994
    %v1052 = vsub.f32 %v639, %v994
    %v1053 = vsub.f32 %v644, %v994
    %v1054 = vsub.f32 %v647, %v994
    %v1055 = vsub.f32 %v652, %v994
    %v1056 = vsub.f32 %v655, %v994
    %v1057 = vsub.f32 %v660, %v994
    %v1058 = vsub.f32 %v663, %v994
    %v1059 = vsel %vm797, %v995, 0.0
    %v1060 = vsel %vm798, %v996, 0.0
    %v1061 = vsel %vm799, %v997, 0.0
    %v1062 = vsel %vm800, %v998, 0.0
    %v1063 = vsel %vm801, %v999, 0.0
    %v1064 = vsel %vm802, %v1000, 0.0
    %v1065 = vsel %vm803, %v1001, 0.0
    %v1066 = vsel %vm804, %v1002, 0.0
    %v1067 = vsel %vm805, %v1003, 0.0
    %v1068 = vsel %vm806, %v1004, 0.0
    %v1069 = vsel %vm807, %v1005, 0.0
    %v1070 = vsel %vm808, %v1006, 0.0
    %v1071 = vsel %vm809, %v1007, 0.0
    %v1072 = vsel %vm810, %v1008, 0.0
    %v1073 = vsel %vm811, %v1009, 0.0
    %v1074 = vsel %vm812, %v1010, 0.0
    %v1075 = vsel %vm813, %v1011, 0.0
    %v1076 = vsel %vm814, %v1012, 0.0
    %v1077 = vsel %vm815, %v1013, 0.0
    %v1078 = vsel %vm816, %v1014, 0.0
    %v1079 = vsel %vm817, %v1015, 0.0
    %v1080 = vsel %vm818, %v1016, 0.0
    %v1081 = vsel %vm819, %v1017, 0.0
    %v1082 = vsel %vm820, %v1018, 0.0
    %v1083 = vsel %vm821, %v1019, 0.0
    %v1084 = vsel %vm822, %v1020, 0.0
    %v1085 = vsel %vm823, %v1021, 0.0
    %v1086 = vsel %vm824, %v1022, 0.0
    %v1087 = vsel %vm825, %v1023, 0.0
    %v1088 = vsel %vm826, %v1024, 0.0
    %v1089 = vsel %vm827, %v1025, 0.0
    %v1090 = vsel %vm828, %v1026, 0.0
    %v1091 = vsel %vm829, %v1027, 0.0
    %v1092 = vsel %vm830, %v1028, 0.0
    %v1093 = vsel %vm831, %v1029, 0.0
    %v1094 = vsel %vm832, %v1030, 0.0
    %v1095 = vsel %vm833, %v1031, 0.0
    %v1096 = vsel %vm834, %v1032, 0.0
    %v1097 = vsel %vm835, %v1033, 0.0
    %v1098 = vsel %vm836, %v1034, 0.0
    %v1099 = vsel %vm837, %v1035, 0.0
    %v1100 = vsel %vm838, %v1036, 0.0
    %v1101 = vsel %vm839, %v1037, 0.0
    %v1102 = vsel %vm840, %v1038, 0.0
    %v1103 = vsel %vm841, %v1039, 0.0
    %v1104 = vsel %vm842, %v1040, 0.0
    %v1105 = vsel %vm843, %v1041, 0.0
    %v1106 = vsel %vm844, %v1042, 0.0
    %v1107 = vsel %vm845, %v1043, 0.0
    %v1108 = vsel %vm846, %v1044, 0.0
    %v1109 = vsel %vm847, %v1045, 0.0
    %v1110 = vsel %vm848, %v1046, 0.0
    %v1111 = vsel %vm849, %v1047, 0.0
    %v1112 = vsel %vm850, %v1048, 0.0
    %v1113 = vsel %vm851, %v1049, 0.0
    %v1114 = vsel %vm852, %v1050, 0.0
    %v1115 = vsel %vm853, %v1051, 0.0
    %v1116 = vsel %vm854, %v1052, 0.0
    %v1117 = vsel %vm855, %v1053, 0.0
    %v1118 = vsel %vm856, %v1054, 0.0
    %v1119 = vsel %vm857, %v1055, 0.0
    %v1120 = vsel %vm858, %v1056, 0.0
    %v1121 = vsel %vm859, %v1057, 0.0
    %v1122 = vsel %vm860, %v1058, 0.0
    %v1123 = vmul.f32 %v1059, %v1059
    %v1124 = vmul.f32 %v1060, %v1060
    %v1125 = vmul.f32 %v1061, %v1061
    %v1126 = vmul.f32 %v1062, %v1062
    %v1127 = vmul.f32 %v1063, %v1063
    %v1128 = vmul.f32 %v1064, %v1064
    %v1129 = vmul.f32 %v1065, %v1065
    %v1130 = vmul.f32 %v1066, %v1066
    %v1131 = vmul.f32 %v1067, %v1067
    %v1132 = vmul.f32 %v1068, %v1068
    %v1133 = vmul.f32 %v1069, %v1069
    %v1134 = vmul.f32 %v1070, %v1070
    %v1135 = vmul.f32 %v1071, %v1071
    %v1136 = vmul.f32 %v1072, %v1072
    %v1137 = vmul.f32 %v1073, %v1073
    %v1138 = vmul.f32 %v1074, %v1074
    %v1139 = vmul.f32 %v1075, %v1075
    %v1140 = vmul.f32 %v1076, %v1076
    %v1141 = vmul.f32 %v1077, %v1077
    %v1142 = vmul.f32 %v1078, %v1078
    %v1143 = vmul.f32 %v1079, %v1079
    %v1144 = vmul.f32 %v1080, %v1080
    %v1145 = vmul.f32 %v1081, %v1081
    %v1146 = vmul.f32 %v1082, %v1082
    %v1147 = vmul.f32 %v1083, %v1083
    %v1148 = vmul.f32 %v1084, %v1084
    %v1149 = vmul.f32 %v1085, %v1085
    %v1150 = vmul.f32 %v1086, %v1086
    %v1151 = vmul.f32 %v1087, %v1087
    %v1152 = vmul.f32 %v1088, %v1088
    %v1153 = vmul.f32 %v1089, %v1089
    %v1154 = vmul.f32 %v1090, %v1090
    %v1155 = vmul.f32 %v1091, %v1091
    %v1156 = vmul.f32 %v1092, %v1092
    %v1157 = vmul.f32 %v1093, %v1093
    %v1158 = vmul.f32 %v1094, %v1094
    %v1159 = vmul.f32 %v1095, %v1095
    %v1160 = vmul.f32 %v1096, %v1096
    %v1161 = vmul.f32 %v1097, %v1097
    %v1162 = vmul.f32 %v1098, %v1098
    %v1163 = vmul.f32 %v1099, %v1099
    %v1164 = vmul.f32 %v1100, %v1100
    %v1165 = vmul.f32 %v1101, %v1101
    %v1166 = vmul.f32 %v1102, %v1102
    %v1167 = vmul.f32 %v1103, %v1103
    %v1168 = vmul.f32 %v1104, %v1104
    %v1169 = vmul.f32 %v1105, %v1105
    %v1170 = vmul.f32 %v1106, %v1106
    %v1171 = vmul.f32 %v1107, %v1107
    %v1172 = vmul.f32 %v1108, %v1108
    %v1173 = vmul.f32 %v1109, %v1109
    %v1174 = vmul.f32 %v1110, %v1110
    %v1175 = vmul.f32 %v1111, %v1111
    %v1176 = vmul.f32 %v1112, %v1112
    %v1177 = vmul.f32 %v1113, %v1113
    %v1178 = vmul.f32 %v1114, %v1114
    %v1179 = vmul.f32 %v1115, %v1115
    %v1180 = vmul.f32 %v1116, %v1116
    %v1181 = vmul.f32 %v1117, %v1117
    %v1182 = vmul.f32 %v1118, %v1118
    %v1183 = vmul.f32 %v1119, %v1119
    %v1184 = vmul.f32 %v1120, %v1120
    %v1185 = vmul.f32 %v1121, %v1121
    %v1186 = vmul.f32 %v1122, %v1122
    %v1187 = vadd.f32 %v1123, %v1124
    %v1188 = vadd.f32 %v1187, %v1125
    %v1189 = vadd.f32 %v1188, %v1126
    %v1190 = vadd.f32 %v1189, %v1127
    %v1191 = vadd.f32 %v1190, %v1128
    %v1192 = vadd.f32 %v1191, %v1129
    %v1193 = vadd.f32 %v1192, %v1130
    %v1194 = vadd.f32 %v1193, %v1131
    %v1195 = vadd.f32 %v1194, %v1132
    %v1196 = vadd.f32 %v1195, %v1133
    %v1197 = vadd.f32 %v1196, %v1134
    %v1198 = vadd.f32 %v1197, %v1135
    %v1199 = vadd.f32 %v1198, %v1136
    %v1200 = vadd.f32 %v1199, %v1137
    %v1201 = vadd.f32 %v1200, %v1138
    %v1202 = vadd.f32 %v1201, %v1139
    %v1203 = vadd.f32 %v1202, %v1140
    %v1204 = vadd.f32 %v1203, %v1141
    %v1205 = vadd.f32 %v1204, %v1142
    %v1206 = vadd.f32 %v1205, %v1143
    %v1207 = vadd.f32 %v1206, %v1144
    %v1208 = vadd.f32 %v1207, %v1145
    %v1209 = vadd.f32 %v1208, %v1146
    %v1210 = vadd.f32 %v1209, %v1147
    %v1211 = vadd.f32 %v1210, %v1148
    %v1212 = vadd.f32 %v1211, %v1149
    %v1213 = vadd.f32 %v1212, %v1150
    %v1214 = vadd.f32 %v1213, %v1151
    %v1215 = vadd.f32 %v1214, %v1152
    %v1216 = vadd.f32 %v1215, %v1153
    %v1217 = vadd.f32 %v1216, %v1154
    %v1218 = vadd.f32 %v1217, %v1155
    %v1219 = vadd.f32 %v1218, %v1156
    %v1220 = vadd.f32 %v1219, %v1157
    %v1221 = vadd.f32 %v1220, %v1158
    %v1222 = vadd.f32 %v1221, %v1159
    %v1223 = vadd.f32 %v1222, %v1160
    %v1224 = vadd.f32 %v1223, %v1161
    %v1225 = vadd.f32 %v1224, %v1162
    %v1226 = vadd.f32 %v1225, %v1163
    %v1227 = vadd.f32 %v1226, %v1164
    %v1228 = vadd.f32 %v1227, %v1165
    %v1229 = vadd.f32 %v1228, %v1166
    %v1230 = vadd.f32 %v1229, %v1167
    %v1231 = vadd.f32 %v1230, %v1168
    %v1232 = vadd.f32 %v1231, %v1169
    %v1233 = vadd.f32 %v1232, %v1170
    %v1234 = vadd.f32 %v1233, %v1171
    %v1235 = vadd.f32 %v1234, %v1172
    %v1236 = vadd.f32 %v1235, %v1173
    %v1237 = vadd.f32 %v1236, %v1174
    %v1238 = vadd.f32 %v1237, %v1175
    %v1239 = vadd.f32 %v1238, %v1176
    %v1240 = vadd.f32 %v1239, %v1177
    %v1241 = vadd.f32 %v1240, %v1178
    %v1242 = vadd.f32 %v1241, %v1179
    %v1243 = vadd.f32 %v1242, %v1180
    %v1244 = vadd.f32 %v1243, %v1181
    %v1245 = vadd.f32 %v1244, %v1182
    %v1246 = vadd.f32 %v1245, %v1183
    %v1247 = vadd.f32 %v1246, %v1184
    %v1248 = vadd.f32 %v1247, %v1185
    %v1249 = vadd.f32 %v1248, %v1186
    %v1250 = vrot.slane %v1249, 4
    %v1251 = vadd.f32 %v1249, %v1250
    %v1252 = vrot.slane %v1251, 2
    %v1253 = vadd.f32 %v1251, %v1252
    %v1254 = vrot.slane %v1253, 1
    %v1255 = vadd.f32 %v1253, %v1254
    %v1256 = vmul.f32 %v1255, 0.001953125
    %v1257 = vld [vmem:[%s3] sm:$0x1]
    %v1258 = vadd.f32 %v1256, 1e-05
    %v1259 = vrsqrt.pop %v1258
    %v1260 = vmul.f32 %v1257, %v1259
    %v1262 = vlaneseq
    %v1263 = vshrl.u32 %v1262, 7
    %v1264 = vsub.s32 0, %v1263
    %v1265 = vrot.slane %v1260, %v1264
    %v1267 = vmul.f32 %v412, %v1265
    %v1268 = vmul.f32 %v415, %v1265
    %v1269 = vmul.f32 %v420, %v1265
    %v1270 = vmul.f32 %v423, %v1265
    %v1271 = vmul.f32 %v428, %v1265
    %v1272 = vmul.f32 %v431, %v1265
    %v1273 = vmul.f32 %v436, %v1265
    %v1274 = vmul.f32 %v439, %v1265
    %v1275 = vmul.f32 %v444, %v1265
    %v1276 = vmul.f32 %v447, %v1265
    %v1277 = vmul.f32 %v452, %v1265
    %v1278 = vmul.f32 %v455, %v1265
    %v1279 = vmul.f32 %v460, %v1265
    %v1280 = vmul.f32 %v463, %v1265
    %v1281 = vmul.f32 %v468, %v1265
    %v1282 = vmul.f32 %v471, %v1265
    %v1283 = vmul.f32 %v476, %v1265
    %v1284 = vmul.f32 %v479, %v1265
    %v1285 = vmul.f32 %v484, %v1265
    %v1286 = vmul.f32 %v487, %v1265
    %v1287 = vmul.f32 %v492, %v1265
    %v1288 = vmul.f32 %v495, %v1265
    %v1289 = vmul.f32 %v500, %v1265
    %v1290 = vmul.f32 %v503, %v1265
    %v1291 = vmul.f32 %v508, %v1265
    %v1292 = vmul.f32 %v511, %v1265
    %v1293 = vmul.f32 %v516, %v1265
    %v1294 = vmul.f32 %v519, %v1265
    %v1295 = vmul.f32 %v524, %v1265
    %v1296 = vmul.f32 %v527, %v1265
    %v1297 = vmul.f32 %v532, %v1265
    %v1298 = vmul.f32 %v535, %v1265
    %v1299 = vmul.f32 %v540, %v1265
    %v1300 = vmul.f32 %v543, %v1265
    %v1301 = vmul.f32 %v548, %v1265
    %v1302 = vmul.f32 %v551, %v1265
    %v1303 = vmul.f32 %v556, %v1265
    %v1304 = vmul.f32 %v559, %v1265
    %v1305 = vmul.f32 %v564, %v1265
    %v1306 = vmul.f32 %v567, %v1265
    %v1307 = vmul.f32 %v572, %v1265
    %v1308 = vmul.f32 %v575, %v1265
    %v1309 = vmul.f32 %v580, %v1265
    %v1310 = vmul.f32 %v583, %v1265
    %v1311 = vmul.f32 %v588, %v1265
    %v1312 = vmul.f32 %v591, %v1265
    %v1313 = vmul.f32 %v596, %v1265
    %v1314 = vmul.f32 %v599, %v1265
    %v1315 = vmul.f32 %v604, %v1265
    %v1316 = vmul.f32 %v607, %v1265
    %v1317 = vmul.f32 %v612, %v1265
    %v1318 = vmul.f32 %v615, %v1265
    %v1319 = vmul.f32 %v620, %v1265
    %v1320 = vmul.f32 %v623, %v1265
    %v1321 = vmul.f32 %v628, %v1265
    %v1322 = vmul.f32 %v631, %v1265
    %v1323 = vmul.f32 %v636, %v1265
    %v1324 = vmul.f32 %v639, %v1265
    %v1325 = vmul.f32 %v644, %v1265
    %v1326 = vmul.f32 %v647, %v1265
    %v1327 = vmul.f32 %v652, %v1265
    %v1328 = vmul.f32 %v655, %v1265
    %v1329 = vmul.f32 %v660, %v1265
    %v1330 = vmul.f32 %v663, %v1265
    %v1331 = vld [vmem:[%s4] sm:$0x1]
    %v1332 = vmul.f32 %v994, %v1260
    %v1333 = vsub.f32 %v1331, %v1332
    %v1335 = vlaneseq
    %v1336 = vshrl.u32 %v1335, 7
    %v1337 = vsub.s32 0, %v1336
    %v1338 = vrot.slane %v1333, %v1337
    %v1340 = vadd.f32 %v1267, %v1338
    %v1341 = vadd.f32 %v1268, %v1338
    %v1342 = vadd.f32 %v1269, %v1338
    %v1343 = vadd.f32 %v1270, %v1338
    %v1344 = vadd.f32 %v1271, %v1338
    %v1345 = vadd.f32 %v1272, %v1338
    %v1346 = vadd.f32 %v1273, %v1338
    %v1347 = vadd.f32 %v1274, %v1338
    %v1348 = vadd.f32 %v1275, %v1338
    %v1349 = vadd.f32 %v1276, %v1338
    %v1350 = vadd.f32 %v1277, %v1338
    %v1351 = vadd.f32 %v1278, %v1338
    %v1352 = vadd.f32 %v1279, %v1338
    %v1353 = vadd.f32 %v1280, %v1338
    %v1354 = vadd.f32 %v1281, %v1338
    %v1355 = vadd.f32 %v1282, %v1338
    %v1356 = vadd.f32 %v1283, %v1338
    %v1357 = vadd.f32 %v1284, %v1338
    %v1358 = vadd.f32 %v1285, %v1338
    %v1359 = vadd.f32 %v1286, %v1338
    %v1360 = vadd.f32 %v1287, %v1338
    %v1361 = vadd.f32 %v1288, %v1338
    %v1362 = vadd.f32 %v1289, %v1338
    %v1363 = vadd.f32 %v1290, %v1338
    %v1364 = vadd.f32 %v1291, %v1338
    %v1365 = vadd.f32 %v1292, %v1338
    %v1366 = vadd.f32 %v1293, %v1338
    %v1367 = vadd.f32 %v1294, %v1338
    %v1368 = vadd.f32 %v1295, %v1338
    %v1369 = vadd.f32 %v1296, %v1338
    %v1370 = vadd.f32 %v1297, %v1338
    %v1371 = vadd.f32 %v1298, %v1338
    %v1372 = vadd.f32 %v1299, %v1338
    %v1373 = vadd.f32 %v1300, %v1338
    %v1374 = vadd.f32 %v1301, %v1338
    %v1375 = vadd.f32 %v1302, %v1338
    %v1376 = vadd.f32 %v1303, %v1338
    %v1377 = vadd.f32 %v1304, %v1338
    %v1378 = vadd.f32 %v1305, %v1338
    %v1379 = vadd.f32 %v1306, %v1338
    %v1380 = vadd.f32 %v1307, %v1338
    %v1381 = vadd.f32 %v1308, %v1338
    %v1382 = vadd.f32 %v1309, %v1338
    %v1383 = vadd.f32 %v1310, %v1338
    %v1384 = vadd.f32 %v1311, %v1338
    %v1385 = vadd.f32 %v1312, %v1338
    %v1386 = vadd.f32 %v1313, %v1338
    %v1387 = vadd.f32 %v1314, %v1338
    %v1388 = vadd.f32 %v1315, %v1338
    %v1389 = vadd.f32 %v1316, %v1338
    %v1390 = vadd.f32 %v1317, %v1338
    %v1391 = vadd.f32 %v1318, %v1338
    %v1392 = vadd.f32 %v1319, %v1338
    %v1393 = vadd.f32 %v1320, %v1338
    %v1394 = vadd.f32 %v1321, %v1338
    %v1395 = vadd.f32 %v1322, %v1338
    %v1396 = vadd.f32 %v1323, %v1338
    %v1397 = vadd.f32 %v1324, %v1338
    %v1398 = vadd.f32 %v1325, %v1338
    %v1399 = vadd.f32 %v1326, %v1338
    %v1400 = vadd.f32 %v1327, %v1338
    %v1401 = vadd.f32 %v1328, %v1338
    %v1402 = vadd.f32 %v1329, %v1338
    %v1403 = vadd.f32 %v1330, %v1338
    %v1404 = vmax.f32 %v1340, 0.0
    %v1405 = vmax.f32 %v1341, 0.0
    %v1406 = vmax.f32 %v1342, 0.0
    %v1407 = vmax.f32 %v1343, 0.0
    %v1408 = vmax.f32 %v1344, 0.0
    %v1409 = vmax.f32 %v1345, 0.0
    %v1410 = vmax.f32 %v1346, 0.0
    %v1411 = vmax.f32 %v1347, 0.0
    %v1412 = vmax.f32 %v1348, 0.0
    %v1413 = vmax.f32 %v1349, 0.0
    %v1414 = vmax.f32 %v1350, 0.0
    %v1415 = vmax.f32 %v1351, 0.0
    %v1416 = vmax.f32 %v1352, 0.0
    %v1417 = vmax.f32 %v1353, 0.0
    %v1418 = vmax.f32 %v1354, 0.0
    %v1419 = vmax.f32 %v1355, 0.0
    %v1420 = vmax.f32 %v1356, 0.0
    %v1421 = vmax.f32 %v1357, 0.0
    %v1422 = vmax.f32 %v1358, 0.0
    %v1423 = vmax.f32 %v1359, 0.0
    %v1424 = vmax.f32 %v1360, 0.0
    %v1425 = vmax.f32 %v1361, 0.0
    %v1426 = vmax.f32 %v1362, 0.0
    %v1427 = vmax.f32 %v1363, 0.0
    %v1428 = vmax.f32 %v1364, 0.0
    %v1429 = vmax.f32 %v1365, 0.0
    %v1430 = vmax.f32 %v1366, 0.0
    %v1431 = vmax.f32 %v1367, 0.0
    %v1432 = vmax.f32 %v1368, 0.0
    %v1433 = vmax.f32 %v1369, 0.0
    %v1434 = vmax.f32 %v1370, 0.0
    %v1435 = vmax.f32 %v1371, 0.0
    %v1436 = vmax.f32 %v1372, 0.0
    %v1437 = vmax.f32 %v1373, 0.0
    %v1438 = vmax.f32 %v1374, 0.0
    %v1439 = vmax.f32 %v1375, 0.0
    %v1440 = vmax.f32 %v1376, 0.0
    %v1441 = vmax.f32 %v1377, 0.0
    %v1442 = vmax.f32 %v1378, 0.0
    %v1443 = vmax.f32 %v1379, 0.0
    %v1444 = vmax.f32 %v1380, 0.0
    %v1445 = vmax.f32 %v1381, 0.0
    %v1446 = vmax.f32 %v1382, 0.0
    %v1447 = vmax.f32 %v1383, 0.0
    %v1448 = vmax.f32 %v1384, 0.0
    %v1449 = vmax.f32 %v1385, 0.0
    %v1450 = vmax.f32 %v1386, 0.0
    %v1451 = vmax.f32 %v1387, 0.0
    %v1452 = vmax.f32 %v1388, 0.0
    %v1453 = vmax.f32 %v1389, 0.0
    %v1454 = vmax.f32 %v1390, 0.0
    %v1455 = vmax.f32 %v1391, 0.0
    %v1456 = vmax.f32 %v1392, 0.0
    %v1457 = vmax.f32 %v1393, 0.0
    %v1458 = vmax.f32 %v1394, 0.0
    %v1459 = vmax.f32 %v1395, 0.0
    %v1460 = vmax.f32 %v1396, 0.0
    %v1461 = vmax.f32 %v1397, 0.0
    %v1462 = vmax.f32 %v1398, 0.0
    %v1463 = vmax.f32 %v1399, 0.0
    %v1464 = vmax.f32 %v1400, 0.0
    %v1465 = vmax.f32 %v1401, 0.0
    %v1466 = vmax.f32 %v1402, 0.0
    %v1467 = vmax.f32 %v1403, 0.0
    %v1468 = vlaneseq
    %v1469 = vand.u32 %v1468, 127
    %v1470 = vmul.u32 %v733, 128
    %v1471 = vmul.u32 %v734, 128
    %v1472 = vmul.u32 %v735, 128
    %v1473 = vmul.u32 %v736, 128
    %v1474 = vmul.u32 %v737, 128
    %v1475 = vmul.u32 %v738, 128
    %v1476 = vmul.u32 %v739, 128
    %v1477 = vmul.u32 %v740, 128
    %v1478 = vmul.u32 %v741, 128
    %v1479 = vmul.u32 %v742, 128
    %v1480 = vmul.u32 %v743, 128
    %v1481 = vmul.u32 %v744, 128
    %v1482 = vmul.u32 %v745, 128
    %v1483 = vmul.u32 %v746, 128
    %v1484 = vmul.u32 %v747, 128
    %v1485 = vmul.u32 %v748, 128
    %v1486 = vmul.u32 %v749, 128
    %v1487 = vmul.u32 %v750, 128
    %v1488 = vmul.u32 %v751, 128
    %v1489 = vmul.u32 %v752, 128
    %v1490 = vmul.u32 %v753, 128
    %v1491 = vmul.u32 %v754, 128
    %v1492 = vmul.u32 %v755, 128
    %v1493 = vmul.u32 %v756, 128
    %v1494 = vmul.u32 %v757, 128
    %v1495 = vmul.u32 %v758, 128
    %v1496 = vmul.u32 %v759, 128
    %v1497 = vmul.u32 %v760, 128
    %v1498 = vmul.u32 %v761, 128
    %v1499 = vmul.u32 %v762, 128
    %v1500 = vmul.u32 %v763, 128
    %v1501 = vmul.u32 %v764, 128
    %v1502 = vmul.u32 %v765, 128
    %v1503 = vmul.u32 %v766, 128
    %v1504 = vmul.u32 %v767, 128
    %v1505 = vmul.u32 %v768, 128
    %v1506 = vmul.u32 %v769, 128
    %v1507 = vmul.u32 %v770, 128
    %v1508 = vmul.u32 %v771, 128
    %v1509 = vmul.u32 %v772, 128
    %v1510 = vmul.u32 %v773, 128
    %v1511 = vmul.u32 %v774, 128
    %v1512 = vmul.u32 %v775, 128
    %v1513 = vmul.u32 %v776, 128
    %v1514 = vmul.u32 %v777, 128
    %v1515 = vmul.u32 %v778, 128
    %v1516 = vmul.u32 %v779, 128
    %v1517 = vmul.u32 %v780, 128
    %v1518 = vmul.u32 %v781, 128
    %v1519 = vmul.u32 %v782, 128
    %v1520 = vmul.u32 %v783, 128
    %v1521 = vmul.u32 %v784, 128
    %v1522 = vmul.u32 %v785, 128
    %v1523 = vmul.u32 %v786, 128
    %v1524 = vmul.u32 %v787, 128
    %v1525 = vmul.u32 %v788, 128
    %v1526 = vmul.u32 %v789, 128
    %v1527 = vmul.u32 %v790, 128
    %v1528 = vmul.u32 %v791, 128
    %v1529 = vmul.u32 %v792, 128
    %v1530 = vmul.u32 %v793, 128
    %v1531 = vmul.u32 %v794, 128
    %v1532 = vmul.u32 %v795, 128
    %v1533 = vmul.u32 %v796, 128
    %v1534 = vadd.s32 %v1470, %v1469
    %v1535 = vadd.s32 %v1471, %v1469
    %v1536 = vadd.s32 %v1472, %v1469
    %v1537 = vadd.s32 %v1473, %v1469
    %v1538 = vadd.s32 %v1474, %v1469
    %v1539 = vadd.s32 %v1475, %v1469
    %v1540 = vadd.s32 %v1476, %v1469
    %v1541 = vadd.s32 %v1477, %v1469
    %v1542 = vadd.s32 %v1478, %v1469
    %v1543 = vadd.s32 %v1479, %v1469
    %v1544 = vadd.s32 %v1480, %v1469
    %v1545 = vadd.s32 %v1481, %v1469
    %v1546 = vadd.s32 %v1482, %v1469
    %v1547 = vadd.s32 %v1483, %v1469
    %v1548 = vadd.s32 %v1484, %v1469
    %v1549 = vadd.s32 %v1485, %v1469
    %v1550 = vadd.s32 %v1486, %v1469
    %v1551 = vadd.s32 %v1487, %v1469
    %v1552 = vadd.s32 %v1488, %v1469
    %v1553 = vadd.s32 %v1489, %v1469
    %v1554 = vadd.s32 %v1490, %v1469
    %v1555 = vadd.s32 %v1491, %v1469
    %v1556 = vadd.s32 %v1492, %v1469
    %v1557 = vadd.s32 %v1493, %v1469
    %v1558 = vadd.s32 %v1494, %v1469
    %v1559 = vadd.s32 %v1495, %v1469
    %v1560 = vadd.s32 %v1496, %v1469
    %v1561 = vadd.s32 %v1497, %v1469
    %v1562 = vadd.s32 %v1498, %v1469
    %v1563 = vadd.s32 %v1499, %v1469
    %v1564 = vadd.s32 %v1500, %v1469
    %v1565 = vadd.s32 %v1501, %v1469
    %v1566 = vadd.s32 %v1502, %v1469
    %v1567 = vadd.s32 %v1503, %v1469
    %v1568 = vadd.s32 %v1504, %v1469
    %v1569 = vadd.s32 %v1505, %v1469
    %v1570 = vadd.s32 %v1506, %v1469
    %v1571 = vadd.s32 %v1507, %v1469
    %v1572 = vadd.s32 %v1508, %v1469
    %v1573 = vadd.s32 %v1509, %v1469
    %v1574 = vadd.s32 %v1510, %v1469
    %v1575 = vadd.s32 %v1511, %v1469
    %v1576 = vadd.s32 %v1512, %v1469
    %v1577 = vadd.s32 %v1513, %v1469
    %v1578 = vadd.s32 %v1514, %v1469
    %v1579 = vadd.s32 %v1515, %v1469
    %v1580 = vadd.s32 %v1516, %v1469
    %v1581 = vadd.s32 %v1517, %v1469
    %v1582 = vadd.s32 %v1518, %v1469
    %v1583 = vadd.s32 %v1519, %v1469
    %v1584 = vadd.s32 %v1520, %v1469
    %v1585 = vadd.s32 %v1521, %v1469
    %v1586 = vadd.s32 %v1522, %v1469
    %v1587 = vadd.s32 %v1523, %v1469
    %v1588 = vadd.s32 %v1524, %v1469
    %v1589 = vadd.s32 %v1525, %v1469
    %v1590 = vadd.s32 %v1526, %v1469
    %v1591 = vadd.s32 %v1527, %v1469
    %v1592 = vadd.s32 %v1528, %v1469
    %v1593 = vadd.s32 %v1529, %v1469
    %v1594 = vadd.s32 %v1530, %v1469
    %v1595 = vadd.s32 %v1531, %v1469
    %v1596 = vadd.s32 %v1532, %v1469
    %v1597 = vadd.s32 %v1533, %v1469
    %v1598 = vmul.u32 %v1534, 2654435761
    %v1599 = vmul.u32 %v1535, 2654435761
    %v1600 = vmul.u32 %v1536, 2654435761
    %v1601 = vmul.u32 %v1537, 2654435761
    %v1602 = vmul.u32 %v1538, 2654435761
    %v1603 = vmul.u32 %v1539, 2654435761
    %v1604 = vmul.u32 %v1540, 2654435761
    %v1605 = vmul.u32 %v1541, 2654435761
    %v1606 = vmul.u32 %v1542, 2654435761
    %v1607 = vmul.u32 %v1543, 2654435761
    %v1608 = vmul.u32 %v1544, 2654435761
    %v1609 = vmul.u32 %v1545, 2654435761
    %v1610 = vmul.u32 %v1546, 2654435761
    %v1611 = vmul.u32 %v1547, 2654435761
    %v1612 = vmul.u32 %v1548, 2654435761
    %v1613 = vmul.u32 %v1549, 2654435761
    %v1614 = vmul.u32 %v1550, 2654435761
    %v1615 = vmul.u32 %v1551, 2654435761
    %v1616 = vmul.u32 %v1552, 2654435761
    %v1617 = vmul.u32 %v1553, 2654435761
    %v1618 = vmul.u32 %v1554, 2654435761
    %v1619 = vmul.u32 %v1555, 2654435761
    %v1620 = vmul.u32 %v1556, 2654435761
    %v1621 = vmul.u32 %v1557, 2654435761
    %v1622 = vmul.u32 %v1558, 2654435761
    %v1623 = vmul.u32 %v1559, 2654435761
    %v1624 = vmul.u32 %v1560, 2654435761
    %v1625 = vmul.u32 %v1561, 2654435761
    %v1626 = vmul.u32 %v1562, 2654435761
    %v1627 = vmul.u32 %v1563, 2654435761
    %v1628 = vmul.u32 %v1564, 2654435761
    %v1629 = vmul.u32 %v1565, 2654435761
    %v1630 = vmul.u32 %v1566, 2654435761
    %v1631 = vmul.u32 %v1567, 2654435761
    %v1632 = vmul.u32 %v1568, 2654435761
    %v1633 = vmul.u32 %v1569, 2654435761
    %v1634 = vmul.u32 %v1570, 2654435761
    %v1635 = vmul.u32 %v1571, 2654435761
    %v1636 = vmul.u32 %v1572, 2654435761
    %v1637 = vmul.u32 %v1573, 2654435761
    %v1638 = vmul.u32 %v1574, 2654435761
    %v1639 = vmul.u32 %v1575, 2654435761
    %v1640 = vmul.u32 %v1576, 2654435761
    %v1641 = vmul.u32 %v1577, 2654435761
    %v1642 = vmul.u32 %v1578, 2654435761
    %v1643 = vmul.u32 %v1579, 2654435761
    %v1644 = vmul.u32 %v1580, 2654435761
    %v1645 = vmul.u32 %v1581, 2654435761
    %v1646 = vmul.u32 %v1582, 2654435761
    %v1647 = vmul.u32 %v1583, 2654435761
    %v1648 = vmul.u32 %v1584, 2654435761
    %v1649 = vmul.u32 %v1585, 2654435761
    %v1650 = vmul.u32 %v1586, 2654435761
    %v1651 = vmul.u32 %v1587, 2654435761
    %v1652 = vmul.u32 %v1588, 2654435761
    %v1653 = vmul.u32 %v1589, 2654435761
    %v1654 = vmul.u32 %v1590, 2654435761
    %v1655 = vmul.u32 %v1591, 2654435761
    %v1656 = vmul.u32 %v1592, 2654435761
    %v1657 = vmul.u32 %v1593, 2654435761
    %v1658 = vmul.u32 %v1594, 2654435761
    %v1659 = vmul.u32 %v1595, 2654435761
    %v1660 = vmul.u32 %v1596, 2654435761
    %v1661 = vmul.u32 %v1597, 2654435761
    %v1662 = vshrl.u32 %v1598, 15
    %v1663 = vshrl.u32 %v1599, 15
    %v1664 = vshrl.u32 %v1600, 15
    %v1665 = vshrl.u32 %v1601, 15
    %v1666 = vshrl.u32 %v1602, 15
    %v1667 = vshrl.u32 %v1603, 15
    %v1668 = vshrl.u32 %v1604, 15
    %v1669 = vshrl.u32 %v1605, 15
    %v1670 = vshrl.u32 %v1606, 15
    %v1671 = vshrl.u32 %v1607, 15
    %v1672 = vshrl.u32 %v1608, 15
    %v1673 = vshrl.u32 %v1609, 15
    %v1674 = vshrl.u32 %v1610, 15
    %v1675 = vshrl.u32 %v1611, 15
    %v1676 = vshrl.u32 %v1612, 15
    %v1677 = vshrl.u32 %v1613, 15
    %v1678 = vshrl.u32 %v1614, 15
    %v1679 = vshrl.u32 %v1615, 15
    %v1680 = vshrl.u32 %v1616, 15
    %v1681 = vshrl.u32 %v1617, 15
    %v1682 = vshrl.u32 %v1618, 15
    %v1683 = vshrl.u32 %v1619, 15
    %v1684 = vshrl.u32 %v1620, 15
    %v1685 = vshrl.u32 %v1621, 15
    %v1686 = vshrl.u32 %v1622, 15
    %v1687 = vshrl.u32 %v1623, 15
    %v1688 = vshrl.u32 %v1624, 15
    %v1689 = vshrl.u32 %v1625, 15
    %v1690 = vshrl.u32 %v1626, 15
    %v1691 = vshrl.u32 %v1627, 15
    %v1692 = vshrl.u32 %v1628, 15
    %v1693 = vshrl.u32 %v1629, 15
    %v1694 = vshrl.u32 %v1630, 15
    %v1695 = vshrl.u32 %v1631, 15
    %v1696 = vshrl.u32 %v1632, 15
    %v1697 = vshrl.u32 %v1633, 15
    %v1698 = vshrl.u32 %v1634, 15
    %v1699 = vshrl.u32 %v1635, 15
    %v1700 = vshrl.u32 %v1636, 15
    %v1701 = vshrl.u32 %v1637, 15
    %v1702 = vshrl.u32 %v1638, 15
    %v1703 = vshrl.u32 %v1639, 15
    %v1704 = vshrl.u32 %v1640, 15
    %v1705 = vshrl.u32 %v1641, 15
    %v1706 = vshrl.u32 %v1642, 15
    %v1707 = vshrl.u32 %v1643, 15
    %v1708 = vshrl.u32 %v1644, 15
    %v1709 = vshrl.u32 %v1645, 15
    %v1710 = vshrl.u32 %v1646, 15
    %v1711 = vshrl.u32 %v1647, 15
    %v1712 = vshrl.u32 %v1648, 15
    %v1713 = vshrl.u32 %v1649, 15
    %v1714 = vshrl.u32 %v1650, 15
    %v1715 = vshrl.u32 %v1651, 15
    %v1716 = vshrl.u32 %v1652, 15
    %v1717 = vshrl.u32 %v1653, 15
    %v1718 = vshrl.u32 %v1654, 15
    %v1719 = vshrl.u32 %v1655, 15
    %v1720 = vshrl.u32 %v1656, 15
    %v1721 = vshrl.u32 %v1657, 15
    %v1722 = vshrl.u32 %v1658, 15
    %v1723 = vshrl.u32 %v1659, 15
    %v1724 = vshrl.u32 %v1660, 15
    %v1725 = vshrl.u32 %v1661, 15
    %v1726 = vxor.u32 %v1598, %v1662
    %v1727 = vxor.u32 %v1599, %v1663
    %v1728 = vxor.u32 %v1600, %v1664
    %v1729 = vxor.u32 %v1601, %v1665
    %v1730 = vxor.u32 %v1602, %v1666
    %v1731 = vxor.u32 %v1603, %v1667
    %v1732 = vxor.u32 %v1604, %v1668
    %v1733 = vxor.u32 %v1605, %v1669
    %v1734 = vxor.u32 %v1606, %v1670
    %v1735 = vxor.u32 %v1607, %v1671
    %v1736 = vxor.u32 %v1608, %v1672
    %v1737 = vxor.u32 %v1609, %v1673
    %v1738 = vxor.u32 %v1610, %v1674
    %v1739 = vxor.u32 %v1611, %v1675
    %v1740 = vxor.u32 %v1612, %v1676
    %v1741 = vxor.u32 %v1613, %v1677
    %v1742 = vxor.u32 %v1614, %v1678
    %v1743 = vxor.u32 %v1615, %v1679
    %v1744 = vxor.u32 %v1616, %v1680
    %v1745 = vxor.u32 %v1617, %v1681
    %v1746 = vxor.u32 %v1618, %v1682
    %v1747 = vxor.u32 %v1619, %v1683
    %v1748 = vxor.u32 %v1620, %v1684
    %v1749 = vxor.u32 %v1621, %v1685
    %v1750 = vxor.u32 %v1622, %v1686
    %v1751 = vxor.u32 %v1623, %v1687
    %v1752 = vxor.u32 %v1624, %v1688
    %v1753 = vxor.u32 %v1625, %v1689
    %v1754 = vxor.u32 %v1626, %v1690
    %v1755 = vxor.u32 %v1627, %v1691
    %v1756 = vxor.u32 %v1628, %v1692
    %v1757 = vxor.u32 %v1629, %v1693
    %v1758 = vxor.u32 %v1630, %v1694
    %v1759 = vxor.u32 %v1631, %v1695
    %v1760 = vxor.u32 %v1632, %v1696
    %v1761 = vxor.u32 %v1633, %v1697
    %v1762 = vxor.u32 %v1634, %v1698
    %v1763 = vxor.u32 %v1635, %v1699
    %v1764 = vxor.u32 %v1636, %v1700
    %v1765 = vxor.u32 %v1637, %v1701
    %v1766 = vxor.u32 %v1638, %v1702
    %v1767 = vxor.u32 %v1639, %v1703
    %v1768 = vxor.u32 %v1640, %v1704
    %v1769 = vxor.u32 %v1641, %v1705
    %v1770 = vxor.u32 %v1642, %v1706
    %v1771 = vxor.u32 %v1643, %v1707
    %v1772 = vxor.u32 %v1644, %v1708
    %v1773 = vxor.u32 %v1645, %v1709
    %v1774 = vxor.u32 %v1646, %v1710
    %v1775 = vxor.u32 %v1647, %v1711
    %v1776 = vxor.u32 %v1648, %v1712
    %v1777 = vxor.u32 %v1649, %v1713
    %v1778 = vxor.u32 %v1650, %v1714
    %v1779 = vxor.u32 %v1651, %v1715
    %v1780 = vxor.u32 %v1652, %v1716
    %v1781 = vxor.u32 %v1653, %v1717
    %v1782 = vxor.u32 %v1654, %v1718
    %v1783 = vxor.u32 %v1655, %v1719
    %v1784 = vxor.u32 %v1656, %v1720
    %v1785 = vxor.u32 %v1657, %v1721
    %v1786 = vxor.u32 %v1658, %v1722
    %v1787 = vxor.u32 %v1659, %v1723
    %v1788 = vxor.u32 %v1660, %v1724
    %v1789 = vxor.u32 %v1661, %v1725
    %v1790 = vmul.u32 %v1726, 2246822519
    %v1791 = vmul.u32 %v1727, 2246822519
    %v1792 = vmul.u32 %v1728, 2246822519
    %v1793 = vmul.u32 %v1729, 2246822519
    %v1794 = vmul.u32 %v1730, 2246822519
    %v1795 = vmul.u32 %v1731, 2246822519
    %v1796 = vmul.u32 %v1732, 2246822519
    %v1797 = vmul.u32 %v1733, 2246822519
    %v1798 = vmul.u32 %v1734, 2246822519
    %v1799 = vmul.u32 %v1735, 2246822519
    %v1800 = vmul.u32 %v1736, 2246822519
    %v1801 = vmul.u32 %v1737, 2246822519
    %v1802 = vmul.u32 %v1738, 2246822519
    %v1803 = vmul.u32 %v1739, 2246822519
    %v1804 = vmul.u32 %v1740, 2246822519
    %v1805 = vmul.u32 %v1741, 2246822519
    %v1806 = vmul.u32 %v1742, 2246822519
    %v1807 = vmul.u32 %v1743, 2246822519
    %v1808 = vmul.u32 %v1744, 2246822519
    %v1809 = vmul.u32 %v1745, 2246822519
    %v1810 = vmul.u32 %v1746, 2246822519
    %v1811 = vmul.u32 %v1747, 2246822519
    %v1812 = vmul.u32 %v1748, 2246822519
    %v1813 = vmul.u32 %v1749, 2246822519
    %v1814 = vmul.u32 %v1750, 2246822519
    %v1815 = vmul.u32 %v1751, 2246822519
    %v1816 = vmul.u32 %v1752, 2246822519
    %v1817 = vmul.u32 %v1753, 2246822519
    %v1818 = vmul.u32 %v1754, 2246822519
    %v1819 = vmul.u32 %v1755, 2246822519
    %v1820 = vmul.u32 %v1756, 2246822519
    %v1821 = vmul.u32 %v1757, 2246822519
    %v1822 = vmul.u32 %v1758, 2246822519
    %v1823 = vmul.u32 %v1759, 2246822519
    %v1824 = vmul.u32 %v1760, 2246822519
    %v1825 = vmul.u32 %v1761, 2246822519
    %v1826 = vmul.u32 %v1762, 2246822519
    %v1827 = vmul.u32 %v1763, 2246822519
    %v1828 = vmul.u32 %v1764, 2246822519
    %v1829 = vmul.u32 %v1765, 2246822519
    %v1830 = vmul.u32 %v1766, 2246822519
    %v1831 = vmul.u32 %v1767, 2246822519
    %v1832 = vmul.u32 %v1768, 2246822519
    %v1833 = vmul.u32 %v1769, 2246822519
    %v1834 = vmul.u32 %v1770, 2246822519
    %v1835 = vmul.u32 %v1771, 2246822519
    %v1836 = vmul.u32 %v1772, 2246822519
    %v1837 = vmul.u32 %v1773, 2246822519
    %v1838 = vmul.u32 %v1774, 2246822519
    %v1839 = vmul.u32 %v1775, 2246822519
    %v1840 = vmul.u32 %v1776, 2246822519
    %v1841 = vmul.u32 %v1777, 2246822519
    %v1842 = vmul.u32 %v1778, 2246822519
    %v1843 = vmul.u32 %v1779, 2246822519
    %v1844 = vmul.u32 %v1780, 2246822519
    %v1845 = vmul.u32 %v1781, 2246822519
    %v1846 = vmul.u32 %v1782, 2246822519
    %v1847 = vmul.u32 %v1783, 2246822519
    %v1848 = vmul.u32 %v1784, 2246822519
    %v1849 = vmul.u32 %v1785, 2246822519
    %v1850 = vmul.u32 %v1786, 2246822519
    %v1851 = vmul.u32 %v1787, 2246822519
    %v1852 = vmul.u32 %v1788, 2246822519
    %v1853 = vmul.u32 %v1789, 2246822519
    %v1854 = vshrl.u32 %v1790, 13
    %v1855 = vshrl.u32 %v1791, 13
    %v1856 = vshrl.u32 %v1792, 13
    %v1857 = vshrl.u32 %v1793, 13
    %v1858 = vshrl.u32 %v1794, 13
    %v1859 = vshrl.u32 %v1795, 13
    %v1860 = vshrl.u32 %v1796, 13
    %v1861 = vshrl.u32 %v1797, 13
    %v1862 = vshrl.u32 %v1798, 13
    %v1863 = vshrl.u32 %v1799, 13
    %v1864 = vshrl.u32 %v1800, 13
    %v1865 = vshrl.u32 %v1801, 13
    %v1866 = vshrl.u32 %v1802, 13
    %v1867 = vshrl.u32 %v1803, 13
    %v1868 = vshrl.u32 %v1804, 13
    %v1869 = vshrl.u32 %v1805, 13
    %v1870 = vshrl.u32 %v1806, 13
    %v1871 = vshrl.u32 %v1807, 13
    %v1872 = vshrl.u32 %v1808, 13
    %v1873 = vshrl.u32 %v1809, 13
    %v1874 = vshrl.u32 %v1810, 13
    %v1875 = vshrl.u32 %v1811, 13
    %v1876 = vshrl.u32 %v1812, 13
    %v1877 = vshrl.u32 %v1813, 13
    %v1878 = vshrl.u32 %v1814, 13
    %v1879 = vshrl.u32 %v1815, 13
    %v1880 = vshrl.u32 %v1816, 13
    %v1881 = vshrl.u32 %v1817, 13
    %v1882 = vshrl.u32 %v1818, 13
    %v1883 = vshrl.u32 %v1819, 13
    %v1884 = vshrl.u32 %v1820, 13
    %v1885 = vshrl.u32 %v1821, 13
    %v1886 = vshrl.u32 %v1822, 13
    %v1887 = vshrl.u32 %v1823, 13
    %v1888 = vshrl.u32 %v1824, 13
    %v1889 = vshrl.u32 %v1825, 13
    %v1890 = vshrl.u32 %v1826, 13
    %v1891 = vshrl.u32 %v1827, 13
    %v1892 = vshrl.u32 %v1828, 13
    %v1893 = vshrl.u32 %v1829, 13
    %v1894 = vshrl.u32 %v1830, 13
    %v1895 = vshrl.u32 %v1831, 13
    %v1896 = vshrl.u32 %v1832, 13
    %v1897 = vshrl.u32 %v1833, 13
    %v1898 = vshrl.u32 %v1834, 13
    %v1899 = vshrl.u32 %v1835, 13
    %v1900 = vshrl.u32 %v1836, 13
    %v1901 = vshrl.u32 %v1837, 13
    %v1902 = vshrl.u32 %v1838, 13
    %v1903 = vshrl.u32 %v1839, 13
    %v1904 = vshrl.u32 %v1840, 13
    %v1905 = vshrl.u32 %v1841, 13
    %v1906 = vshrl.u32 %v1842, 13
    %v1907 = vshrl.u32 %v1843, 13
    %v1908 = vshrl.u32 %v1844, 13
    %v1909 = vshrl.u32 %v1845, 13
    %v1910 = vshrl.u32 %v1846, 13
    %v1911 = vshrl.u32 %v1847, 13
    %v1912 = vshrl.u32 %v1848, 13
    %v1913 = vshrl.u32 %v1849, 13
    %v1914 = vshrl.u32 %v1850, 13
    %v1915 = vshrl.u32 %v1851, 13
    %v1916 = vshrl.u32 %v1852, 13
    %v1917 = vshrl.u32 %v1853, 13
    %v1918 = vxor.u32 %v1790, %v1854
    %v1919 = vxor.u32 %v1791, %v1855
    %v1920 = vxor.u32 %v1792, %v1856
    %v1921 = vxor.u32 %v1793, %v1857
    %v1922 = vxor.u32 %v1794, %v1858
    %v1923 = vxor.u32 %v1795, %v1859
    %v1924 = vxor.u32 %v1796, %v1860
    %v1925 = vxor.u32 %v1797, %v1861
    %v1926 = vxor.u32 %v1798, %v1862
    %v1927 = vxor.u32 %v1799, %v1863
    %v1928 = vxor.u32 %v1800, %v1864
    %v1929 = vxor.u32 %v1801, %v1865
    %v1930 = vxor.u32 %v1802, %v1866
    %v1931 = vxor.u32 %v1803, %v1867
    %v1932 = vxor.u32 %v1804, %v1868
    %v1933 = vxor.u32 %v1805, %v1869
    %v1934 = vxor.u32 %v1806, %v1870
    %v1935 = vxor.u32 %v1807, %v1871
    %v1936 = vxor.u32 %v1808, %v1872
    %v1937 = vxor.u32 %v1809, %v1873
    %v1938 = vxor.u32 %v1810, %v1874
    %v1939 = vxor.u32 %v1811, %v1875
    %v1940 = vxor.u32 %v1812, %v1876
    %v1941 = vxor.u32 %v1813, %v1877
    %v1942 = vxor.u32 %v1814, %v1878
    %v1943 = vxor.u32 %v1815, %v1879
    %v1944 = vxor.u32 %v1816, %v1880
    %v1945 = vxor.u32 %v1817, %v1881
    %v1946 = vxor.u32 %v1818, %v1882
    %v1947 = vxor.u32 %v1819, %v1883
    %v1948 = vxor.u32 %v1820, %v1884
    %v1949 = vxor.u32 %v1821, %v1885
    %v1950 = vxor.u32 %v1822, %v1886
    %v1951 = vxor.u32 %v1823, %v1887
    %v1952 = vxor.u32 %v1824, %v1888
    %v1953 = vxor.u32 %v1825, %v1889
    %v1954 = vxor.u32 %v1826, %v1890
    %v1955 = vxor.u32 %v1827, %v1891
    %v1956 = vxor.u32 %v1828, %v1892
    %v1957 = vxor.u32 %v1829, %v1893
    %v1958 = vxor.u32 %v1830, %v1894
    %v1959 = vxor.u32 %v1831, %v1895
    %v1960 = vxor.u32 %v1832, %v1896
    %v1961 = vxor.u32 %v1833, %v1897
    %v1962 = vxor.u32 %v1834, %v1898
    %v1963 = vxor.u32 %v1835, %v1899
    %v1964 = vxor.u32 %v1836, %v1900
    %v1965 = vxor.u32 %v1837, %v1901
    %v1966 = vxor.u32 %v1838, %v1902
    %v1967 = vxor.u32 %v1839, %v1903
    %v1968 = vxor.u32 %v1840, %v1904
    %v1969 = vxor.u32 %v1841, %v1905
    %v1970 = vxor.u32 %v1842, %v1906
    %v1971 = vxor.u32 %v1843, %v1907
    %v1972 = vxor.u32 %v1844, %v1908
    %v1973 = vxor.u32 %v1845, %v1909
    %v1974 = vxor.u32 %v1846, %v1910
    %v1975 = vxor.u32 %v1847, %v1911
    %v1976 = vxor.u32 %v1848, %v1912
    %v1977 = vxor.u32 %v1849, %v1913
    %v1978 = vxor.u32 %v1850, %v1914
    %v1979 = vxor.u32 %v1851, %v1915
    %v1980 = vxor.u32 %v1852, %v1916
    %v1981 = vxor.u32 %v1853, %v1917
    %v1982 = vshrl.u32 %v1918, 9
    %v1983 = vshrl.u32 %v1919, 9
    %v1984 = vshrl.u32 %v1920, 9
    %v1985 = vshrl.u32 %v1921, 9
    %v1986 = vshrl.u32 %v1922, 9
    %v1987 = vshrl.u32 %v1923, 9
    %v1988 = vshrl.u32 %v1924, 9
    %v1989 = vshrl.u32 %v1925, 9
    %v1990 = vshrl.u32 %v1926, 9
    %v1991 = vshrl.u32 %v1927, 9
    %v1992 = vshrl.u32 %v1928, 9
    %v1993 = vshrl.u32 %v1929, 9
    %v1994 = vshrl.u32 %v1930, 9
    %v1995 = vshrl.u32 %v1931, 9
    %v1996 = vshrl.u32 %v1932, 9
    %v1997 = vshrl.u32 %v1933, 9
    %v1998 = vshrl.u32 %v1934, 9
    %v1999 = vshrl.u32 %v1935, 9
    %v2000 = vshrl.u32 %v1936, 9
    %v2001 = vshrl.u32 %v1937, 9
    %v2002 = vshrl.u32 %v1938, 9
    %v2003 = vshrl.u32 %v1939, 9
    %v2004 = vshrl.u32 %v1940, 9
    %v2005 = vshrl.u32 %v1941, 9
    %v2006 = vshrl.u32 %v1942, 9
    %v2007 = vshrl.u32 %v1943, 9
    %v2008 = vshrl.u32 %v1944, 9
    %v2009 = vshrl.u32 %v1945, 9
    %v2010 = vshrl.u32 %v1946, 9
    %v2011 = vshrl.u32 %v1947, 9
    %v2012 = vshrl.u32 %v1948, 9
    %v2013 = vshrl.u32 %v1949, 9
    %v2014 = vshrl.u32 %v1950, 9
    %v2015 = vshrl.u32 %v1951, 9
    %v2016 = vshrl.u32 %v1952, 9
    %v2017 = vshrl.u32 %v1953, 9
    %v2018 = vshrl.u32 %v1954, 9
    %v2019 = vshrl.u32 %v1955, 9
    %v2020 = vshrl.u32 %v1956, 9
    %v2021 = vshrl.u32 %v1957, 9
    %v2022 = vshrl.u32 %v1958, 9
    %v2023 = vshrl.u32 %v1959, 9
    %v2024 = vshrl.u32 %v1960, 9
    %v2025 = vshrl.u32 %v1961, 9
    %v2026 = vshrl.u32 %v1962, 9
    %v2027 = vshrl.u32 %v1963, 9
    %v2028 = vshrl.u32 %v1964, 9
    %v2029 = vshrl.u32 %v1965, 9
    %v2030 = vshrl.u32 %v1966, 9
    %v2031 = vshrl.u32 %v1967, 9
    %v2032 = vshrl.u32 %v1968, 9
    %v2033 = vshrl.u32 %v1969, 9
    %v2034 = vshrl.u32 %v1970, 9
    %v2035 = vshrl.u32 %v1971, 9
    %v2036 = vshrl.u32 %v1972, 9
    %v2037 = vshrl.u32 %v1973, 9
    %v2038 = vshrl.u32 %v1974, 9
    %v2039 = vshrl.u32 %v1975, 9
    %v2040 = vshrl.u32 %v1976, 9
    %v2041 = vshrl.u32 %v1977, 9
    %v2042 = vshrl.u32 %v1978, 9
    %v2043 = vshrl.u32 %v1979, 9
    %v2044 = vshrl.u32 %v1980, 9
    %v2045 = vshrl.u32 %v1981, 9
    %v2046 = vshrl.u32 %v1982, 16
    %v2047 = vand.u32 %v1982, 65535
    %v2048 = vcvt.s32.f32 %v2046
    %v2049 = vmul.f32 %v2048, 65536.0
    %v2050 = vcvt.s32.f32 %v2047
    %v2051 = vadd.f32 %v2049, %v2050
    %v2052 = vshrl.u32 %v1983, 16
    %v2053 = vand.u32 %v1983, 65535
    %v2054 = vcvt.s32.f32 %v2052
    %v2055 = vmul.f32 %v2054, 65536.0
    %v2056 = vcvt.s32.f32 %v2053
    %v2057 = vadd.f32 %v2055, %v2056
    %v2058 = vshrl.u32 %v1984, 16
    %v2059 = vand.u32 %v1984, 65535
    %v2060 = vcvt.s32.f32 %v2058
    %v2061 = vmul.f32 %v2060, 65536.0
    %v2062 = vcvt.s32.f32 %v2059
    %v2063 = vadd.f32 %v2061, %v2062
    %v2064 = vshrl.u32 %v1985, 16
    %v2065 = vand.u32 %v1985, 65535
    %v2066 = vcvt.s32.f32 %v2064
    %v2067 = vmul.f32 %v2066, 65536.0
    %v2068 = vcvt.s32.f32 %v2065
    %v2069 = vadd.f32 %v2067, %v2068
    %v2070 = vshrl.u32 %v1986, 16
    %v2071 = vand.u32 %v1986, 65535
    %v2072 = vcvt.s32.f32 %v2070
    %v2073 = vmul.f32 %v2072, 65536.0
    %v2074 = vcvt.s32.f32 %v2071
    %v2075 = vadd.f32 %v2073, %v2074
    %v2076 = vshrl.u32 %v1987, 16
    %v2077 = vand.u32 %v1987, 65535
    %v2078 = vcvt.s32.f32 %v2076
    %v2079 = vmul.f32 %v2078, 65536.0
    %v2080 = vcvt.s32.f32 %v2077
    %v2081 = vadd.f32 %v2079, %v2080
    %v2082 = vshrl.u32 %v1988, 16
    %v2083 = vand.u32 %v1988, 65535
    %v2084 = vcvt.s32.f32 %v2082
    %v2085 = vmul.f32 %v2084, 65536.0
    %v2086 = vcvt.s32.f32 %v2083
    %v2087 = vadd.f32 %v2085, %v2086
    %v2088 = vshrl.u32 %v1989, 16
    %v2089 = vand.u32 %v1989, 65535
    %v2090 = vcvt.s32.f32 %v2088
    %v2091 = vmul.f32 %v2090, 65536.0
    %v2092 = vcvt.s32.f32 %v2089
    %v2093 = vadd.f32 %v2091, %v2092
    %v2094 = vshrl.u32 %v1990, 16
    %v2095 = vand.u32 %v1990, 65535
    %v2096 = vcvt.s32.f32 %v2094
    %v2097 = vmul.f32 %v2096, 65536.0
    %v2098 = vcvt.s32.f32 %v2095
    %v2099 = vadd.f32 %v2097, %v2098
    %v2100 = vshrl.u32 %v1991, 16
    %v2101 = vand.u32 %v1991, 65535
    %v2102 = vcvt.s32.f32 %v2100
    %v2103 = vmul.f32 %v2102, 65536.0
    %v2104 = vcvt.s32.f32 %v2101
    %v2105 = vadd.f32 %v2103, %v2104
    %v2106 = vshrl.u32 %v1992, 16
    %v2107 = vand.u32 %v1992, 65535
    %v2108 = vcvt.s32.f32 %v2106
    %v2109 = vmul.f32 %v2108, 65536.0
    %v2110 = vcvt.s32.f32 %v2107
    %v2111 = vadd.f32 %v2109, %v2110
    %v2112 = vshrl.u32 %v1993, 16
    %v2113 = vand.u32 %v1993, 65535
    %v2114 = vcvt.s32.f32 %v2112
    %v2115 = vmul.f32 %v2114, 65536.0
    %v2116 = vcvt.s32.f32 %v2113
    %v2117 = vadd.f32 %v2115, %v2116
    %v2118 = vshrl.u32 %v1994, 16
    %v2119 = vand.u32 %v1994, 65535
    %v2120 = vcvt.s32.f32 %v2118
    %v2121 = vmul.f32 %v2120, 65536.0
    %v2122 = vcvt.s32.f32 %v2119
    %v2123 = vadd.f32 %v2121, %v2122
    %v2124 = vshrl.u32 %v1995, 16
    %v2125 = vand.u32 %v1995, 65535
    %v2126 = vcvt.s32.f32 %v2124
    %v2127 = vmul.f32 %v2126, 65536.0
    %v2128 = vcvt.s32.f32 %v2125
    %v2129 = vadd.f32 %v2127, %v2128
    %v2130 = vshrl.u32 %v1996, 16
    %v2131 = vand.u32 %v1996, 65535
    %v2132 = vcvt.s32.f32 %v2130
    %v2133 = vmul.f32 %v2132, 65536.0
    %v2134 = vcvt.s32.f32 %v2131
    %v2135 = vadd.f32 %v2133, %v2134
    %v2136 = vshrl.u32 %v1997, 16
    %v2137 = vand.u32 %v1997, 65535
    %v2138 = vcvt.s32.f32 %v2136
    %v2139 = vmul.f32 %v2138, 65536.0
    %v2140 = vcvt.s32.f32 %v2137
    %v2141 = vadd.f32 %v2139, %v2140
    %v2142 = vshrl.u32 %v1998, 16
    %v2143 = vand.u32 %v1998, 65535
    %v2144 = vcvt.s32.f32 %v2142
    %v2145 = vmul.f32 %v2144, 65536.0
    %v2146 = vcvt.s32.f32 %v2143
    %v2147 = vadd.f32 %v2145, %v2146
    %v2148 = vshrl.u32 %v1999, 16
    %v2149 = vand.u32 %v1999, 65535
    %v2150 = vcvt.s32.f32 %v2148
    %v2151 = vmul.f32 %v2150, 65536.0
    %v2152 = vcvt.s32.f32 %v2149
    %v2153 = vadd.f32 %v2151, %v2152
    %v2154 = vshrl.u32 %v2000, 16
    %v2155 = vand.u32 %v2000, 65535
    %v2156 = vcvt.s32.f32 %v2154
    %v2157 = vmul.f32 %v2156, 65536.0
    %v2158 = vcvt.s32.f32 %v2155
    %v2159 = vadd.f32 %v2157, %v2158
    %v2160 = vshrl.u32 %v2001, 16
    %v2161 = vand.u32 %v2001, 65535
    %v2162 = vcvt.s32.f32 %v2160
    %v2163 = vmul.f32 %v2162, 65536.0
    %v2164 = vcvt.s32.f32 %v2161
    %v2165 = vadd.f32 %v2163, %v2164
    %v2166 = vshrl.u32 %v2002, 16
    %v2167 = vand.u32 %v2002, 65535
    %v2168 = vcvt.s32.f32 %v2166
    %v2169 = vmul.f32 %v2168, 65536.0
    %v2170 = vcvt.s32.f32 %v2167
    %v2171 = vadd.f32 %v2169, %v2170
    %v2172 = vshrl.u32 %v2003, 16
    %v2173 = vand.u32 %v2003, 65535
    %v2174 = vcvt.s32.f32 %v2172
    %v2175 = vmul.f32 %v2174, 65536.0
    %v2176 = vcvt.s32.f32 %v2173
    %v2177 = vadd.f32 %v2175, %v2176
    %v2178 = vshrl.u32 %v2004, 16
    %v2179 = vand.u32 %v2004, 65535
    %v2180 = vcvt.s32.f32 %v2178
    %v2181 = vmul.f32 %v2180, 65536.0
    %v2182 = vcvt.s32.f32 %v2179
    %v2183 = vadd.f32 %v2181, %v2182
    %v2184 = vshrl.u32 %v2005, 16
    %v2185 = vand.u32 %v2005, 65535
    %v2186 = vcvt.s32.f32 %v2184
    %v2187 = vmul.f32 %v2186, 65536.0
    %v2188 = vcvt.s32.f32 %v2185
    %v2189 = vadd.f32 %v2187, %v2188
    %v2190 = vshrl.u32 %v2006, 16
    %v2191 = vand.u32 %v2006, 65535
    %v2192 = vcvt.s32.f32 %v2190
    %v2193 = vmul.f32 %v2192, 65536.0
    %v2194 = vcvt.s32.f32 %v2191
    %v2195 = vadd.f32 %v2193, %v2194
    %v2196 = vshrl.u32 %v2007, 16
    %v2197 = vand.u32 %v2007, 65535
    %v2198 = vcvt.s32.f32 %v2196
    %v2199 = vmul.f32 %v2198, 65536.0
    %v2200 = vcvt.s32.f32 %v2197
    %v2201 = vadd.f32 %v2199, %v2200
    %v2202 = vshrl.u32 %v2008, 16
    %v2203 = vand.u32 %v2008, 65535
    %v2204 = vcvt.s32.f32 %v2202
    %v2205 = vmul.f32 %v2204, 65536.0
    %v2206 = vcvt.s32.f32 %v2203
    %v2207 = vadd.f32 %v2205, %v2206
    %v2208 = vshrl.u32 %v2009, 16
    %v2209 = vand.u32 %v2009, 65535
    %v2210 = vcvt.s32.f32 %v2208
    %v2211 = vmul.f32 %v2210, 65536.0
    %v2212 = vcvt.s32.f32 %v2209
    %v2213 = vadd.f32 %v2211, %v2212
    %v2214 = vshrl.u32 %v2010, 16
    %v2215 = vand.u32 %v2010, 65535
    %v2216 = vcvt.s32.f32 %v2214
    %v2217 = vmul.f32 %v2216, 65536.0
    %v2218 = vcvt.s32.f32 %v2215
    %v2219 = vadd.f32 %v2217, %v2218
    %v2220 = vshrl.u32 %v2011, 16
    %v2221 = vand.u32 %v2011, 65535
    %v2222 = vcvt.s32.f32 %v2220
    %v2223 = vmul.f32 %v2222, 65536.0
    %v2224 = vcvt.s32.f32 %v2221
    %v2225 = vadd.f32 %v2223, %v2224
    %v2226 = vshrl.u32 %v2012, 16
    %v2227 = vand.u32 %v2012, 65535
    %v2228 = vcvt.s32.f32 %v2226
    %v2229 = vmul.f32 %v2228, 65536.0
    %v2230 = vcvt.s32.f32 %v2227
    %v2231 = vadd.f32 %v2229, %v2230
    %v2232 = vshrl.u32 %v2013, 16
    %v2233 = vand.u32 %v2013, 65535
    %v2234 = vcvt.s32.f32 %v2232
    %v2235 = vmul.f32 %v2234, 65536.0
    %v2236 = vcvt.s32.f32 %v2233
    %v2237 = vadd.f32 %v2235, %v2236
    %v2238 = vshrl.u32 %v2014, 16
    %v2239 = vand.u32 %v2014, 65535
    %v2240 = vcvt.s32.f32 %v2238
    %v2241 = vmul.f32 %v2240, 65536.0
    %v2242 = vcvt.s32.f32 %v2239
    %v2243 = vadd.f32 %v2241, %v2242
    %v2244 = vshrl.u32 %v2015, 16
    %v2245 = vand.u32 %v2015, 65535
    %v2246 = vcvt.s32.f32 %v2244
    %v2247 = vmul.f32 %v2246, 65536.0
    %v2248 = vcvt.s32.f32 %v2245
    %v2249 = vadd.f32 %v2247, %v2248
    %v2250 = vshrl.u32 %v2016, 16
    %v2251 = vand.u32 %v2016, 65535
    %v2252 = vcvt.s32.f32 %v2250
    %v2253 = vmul.f32 %v2252, 65536.0
    %v2254 = vcvt.s32.f32 %v2251
    %v2255 = vadd.f32 %v2253, %v2254
    %v2256 = vshrl.u32 %v2017, 16
    %v2257 = vand.u32 %v2017, 65535
    %v2258 = vcvt.s32.f32 %v2256
    %v2259 = vmul.f32 %v2258, 65536.0
    %v2260 = vcvt.s32.f32 %v2257
    %v2261 = vadd.f32 %v2259, %v2260
    %v2262 = vshrl.u32 %v2018, 16
    %v2263 = vand.u32 %v2018, 65535
    %v2264 = vcvt.s32.f32 %v2262
    %v2265 = vmul.f32 %v2264, 65536.0
    %v2266 = vcvt.s32.f32 %v2263
    %v2267 = vadd.f32 %v2265, %v2266
    %v2268 = vshrl.u32 %v2019, 16
    %v2269 = vand.u32 %v2019, 65535
    %v2270 = vcvt.s32.f32 %v2268
    %v2271 = vmul.f32 %v2270, 65536.0
    %v2272 = vcvt.s32.f32 %v2269
    %v2273 = vadd.f32 %v2271, %v2272
    %v2274 = vshrl.u32 %v2020, 16
    %v2275 = vand.u32 %v2020, 65535
    %v2276 = vcvt.s32.f32 %v2274
    %v2277 = vmul.f32 %v2276, 65536.0
    %v2278 = vcvt.s32.f32 %v2275
    %v2279 = vadd.f32 %v2277, %v2278
    %v2280 = vshrl.u32 %v2021, 16
    %v2281 = vand.u32 %v2021, 65535
    %v2282 = vcvt.s32.f32 %v2280
    %v2283 = vmul.f32 %v2282, 65536.0
    %v2284 = vcvt.s32.f32 %v2281
    %v2285 = vadd.f32 %v2283, %v2284
    %v2286 = vshrl.u32 %v2022, 16
    %v2287 = vand.u32 %v2022, 65535
    %v2288 = vcvt.s32.f32 %v2286
    %v2289 = vmul.f32 %v2288, 65536.0
    %v2290 = vcvt.s32.f32 %v2287
    %v2291 = vadd.f32 %v2289, %v2290
    %v2292 = vshrl.u32 %v2023, 16
    %v2293 = vand.u32 %v2023, 65535
    %v2294 = vcvt.s32.f32 %v2292
    %v2295 = vmul.f32 %v2294, 65536.0
    %v2296 = vcvt.s32.f32 %v2293
    %v2297 = vadd.f32 %v2295, %v2296
    %v2298 = vshrl.u32 %v2024, 16
    %v2299 = vand.u32 %v2024, 65535
    %v2300 = vcvt.s32.f32 %v2298
    %v2301 = vmul.f32 %v2300, 65536.0
    %v2302 = vcvt.s32.f32 %v2299
    %v2303 = vadd.f32 %v2301, %v2302
    %v2304 = vshrl.u32 %v2025, 16
    %v2305 = vand.u32 %v2025, 65535
    %v2306 = vcvt.s32.f32 %v2304
    %v2307 = vmul.f32 %v2306, 65536.0
    %v2308 = vcvt.s32.f32 %v2305
    %v2309 = vadd.f32 %v2307, %v2308
    %v2310 = vshrl.u32 %v2026, 16
    %v2311 = vand.u32 %v2026, 65535
    %v2312 = vcvt.s32.f32 %v2310
    %v2313 = vmul.f32 %v2312, 65536.0
    %v2314 = vcvt.s32.f32 %v2311
    %v2315 = vadd.f32 %v2313, %v2314
    %v2316 = vshrl.u32 %v2027, 16
    %v2317 = vand.u32 %v2027, 65535
    %v2318 = vcvt.s32.f32 %v2316
    %v2319 = vmul.f32 %v2318, 65536.0
    %v2320 = vcvt.s32.f32 %v2317
    %v2321 = vadd.f32 %v2319, %v2320
    %v2322 = vshrl.u32 %v2028, 16
    %v2323 = vand.u32 %v2028, 65535
    %v2324 = vcvt.s32.f32 %v2322
    %v2325 = vmul.f32 %v2324, 65536.0
    %v2326 = vcvt.s32.f32 %v2323
    %v2327 = vadd.f32 %v2325, %v2326
    %v2328 = vshrl.u32 %v2029, 16
    %v2329 = vand.u32 %v2029, 65535
    %v2330 = vcvt.s32.f32 %v2328
    %v2331 = vmul.f32 %v2330, 65536.0
    %v2332 = vcvt.s32.f32 %v2329
    %v2333 = vadd.f32 %v2331, %v2332
    %v2334 = vshrl.u32 %v2030, 16
    %v2335 = vand.u32 %v2030, 65535
    %v2336 = vcvt.s32.f32 %v2334
    %v2337 = vmul.f32 %v2336, 65536.0
    %v2338 = vcvt.s32.f32 %v2335
    %v2339 = vadd.f32 %v2337, %v2338
    %v2340 = vshrl.u32 %v2031, 16
    %v2341 = vand.u32 %v2031, 65535
    %v2342 = vcvt.s32.f32 %v2340
    %v2343 = vmul.f32 %v2342, 65536.0
    %v2344 = vcvt.s32.f32 %v2341
    %v2345 = vadd.f32 %v2343, %v2344
    %v2346 = vshrl.u32 %v2032, 16
    %v2347 = vand.u32 %v2032, 65535
    %v2348 = vcvt.s32.f32 %v2346
    %v2349 = vmul.f32 %v2348, 65536.0
    %v2350 = vcvt.s32.f32 %v2347
    %v2351 = vadd.f32 %v2349, %v2350
    %v2352 = vshrl.u32 %v2033, 16
    %v2353 = vand.u32 %v2033, 65535
    %v2354 = vcvt.s32.f32 %v2352
    %v2355 = vmul.f32 %v2354, 65536.0
    %v2356 = vcvt.s32.f32 %v2353
    %v2357 = vadd.f32 %v2355, %v2356
    %v2358 = vshrl.u32 %v2034, 16
    %v2359 = vand.u32 %v2034, 65535
    %v2360 = vcvt.s32.f32 %v2358
    %v2361 = vmul.f32 %v2360, 65536.0
    %v2362 = vcvt.s32.f32 %v2359
    %v2363 = vadd.f32 %v2361, %v2362
    %v2364 = vshrl.u32 %v2035, 16
    %v2365 = vand.u32 %v2035, 65535
    %v2366 = vcvt.s32.f32 %v2364
    %v2367 = vmul.f32 %v2366, 65536.0
    %v2368 = vcvt.s32.f32 %v2365
    %v2369 = vadd.f32 %v2367, %v2368
    %v2370 = vshrl.u32 %v2036, 16
    %v2371 = vand.u32 %v2036, 65535
    %v2372 = vcvt.s32.f32 %v2370
    %v2373 = vmul.f32 %v2372, 65536.0
    %v2374 = vcvt.s32.f32 %v2371
    %v2375 = vadd.f32 %v2373, %v2374
    %v2376 = vshrl.u32 %v2037, 16
    %v2377 = vand.u32 %v2037, 65535
    %v2378 = vcvt.s32.f32 %v2376
    %v2379 = vmul.f32 %v2378, 65536.0
    %v2380 = vcvt.s32.f32 %v2377
    %v2381 = vadd.f32 %v2379, %v2380
    %v2382 = vshrl.u32 %v2038, 16
    %v2383 = vand.u32 %v2038, 65535
    %v2384 = vcvt.s32.f32 %v2382
    %v2385 = vmul.f32 %v2384, 65536.0
    %v2386 = vcvt.s32.f32 %v2383
    %v2387 = vadd.f32 %v2385, %v2386
    %v2388 = vshrl.u32 %v2039, 16
    %v2389 = vand.u32 %v2039, 65535
    %v2390 = vcvt.s32.f32 %v2388
    %v2391 = vmul.f32 %v2390, 65536.0
    %v2392 = vcvt.s32.f32 %v2389
    %v2393 = vadd.f32 %v2391, %v2392
    %v2394 = vshrl.u32 %v2040, 16
    %v2395 = vand.u32 %v2040, 65535
    %v2396 = vcvt.s32.f32 %v2394
    %v2397 = vmul.f32 %v2396, 65536.0
    %v2398 = vcvt.s32.f32 %v2395
    %v2399 = vadd.f32 %v2397, %v2398
    %v2400 = vshrl.u32 %v2041, 16
    %v2401 = vand.u32 %v2041, 65535
    %v2402 = vcvt.s32.f32 %v2400
    %v2403 = vmul.f32 %v2402, 65536.0
    %v2404 = vcvt.s32.f32 %v2401
    %v2405 = vadd.f32 %v2403, %v2404
    %v2406 = vshrl.u32 %v2042, 16
    %v2407 = vand.u32 %v2042, 65535
    %v2408 = vcvt.s32.f32 %v2406
    %v2409 = vmul.f32 %v2408, 65536.0
    %v2410 = vcvt.s32.f32 %v2407
    %v2411 = vadd.f32 %v2409, %v2410
    %v2412 = vshrl.u32 %v2043, 16
    %v2413 = vand.u32 %v2043, 65535
    %v2414 = vcvt.s32.f32 %v2412
    %v2415 = vmul.f32 %v2414, 65536.0
    %v2416 = vcvt.s32.f32 %v2413
    %v2417 = vadd.f32 %v2415, %v2416
    %v2418 = vshrl.u32 %v2044, 16
    %v2419 = vand.u32 %v2044, 65535
    %v2420 = vcvt.s32.f32 %v2418
    %v2421 = vmul.f32 %v2420, 65536.0
    %v2422 = vcvt.s32.f32 %v2419
    %v2423 = vadd.f32 %v2421, %v2422
    %v2424 = vshrl.u32 %v2045, 16
    %v2425 = vand.u32 %v2045, 65535
    %v2426 = vcvt.s32.f32 %v2424
    %v2427 = vmul.f32 %v2426, 65536.0
    %v2428 = vcvt.s32.f32 %v2425
    %v2429 = vadd.f32 %v2427, %v2428
    %v2430 = vmul.f32 %v2051, 1.1920929e-07
    %v2431 = vmul.f32 %v2057, 1.1920929e-07
    %v2432 = vmul.f32 %v2063, 1.1920929e-07
    %v2433 = vmul.f32 %v2069, 1.1920929e-07
    %v2434 = vmul.f32 %v2075, 1.1920929e-07
    %v2435 = vmul.f32 %v2081, 1.1920929e-07
    %v2436 = vmul.f32 %v2087, 1.1920929e-07
    %v2437 = vmul.f32 %v2093, 1.1920929e-07
    %v2438 = vmul.f32 %v2099, 1.1920929e-07
    %v2439 = vmul.f32 %v2105, 1.1920929e-07
    %v2440 = vmul.f32 %v2111, 1.1920929e-07
    %v2441 = vmul.f32 %v2117, 1.1920929e-07
    %v2442 = vmul.f32 %v2123, 1.1920929e-07
    %v2443 = vmul.f32 %v2129, 1.1920929e-07
    %v2444 = vmul.f32 %v2135, 1.1920929e-07
    %v2445 = vmul.f32 %v2141, 1.1920929e-07
    %v2446 = vmul.f32 %v2147, 1.1920929e-07
    %v2447 = vmul.f32 %v2153, 1.1920929e-07
    %v2448 = vmul.f32 %v2159, 1.1920929e-07
    %v2449 = vmul.f32 %v2165, 1.1920929e-07
    %v2450 = vmul.f32 %v2171, 1.1920929e-07
    %v2451 = vmul.f32 %v2177, 1.1920929e-07
    %v2452 = vmul.f32 %v2183, 1.1920929e-07
    %v2453 = vmul.f32 %v2189, 1.1920929e-07
    %v2454 = vmul.f32 %v2195, 1.1920929e-07
    %v2455 = vmul.f32 %v2201, 1.1920929e-07
    %v2456 = vmul.f32 %v2207, 1.1920929e-07
    %v2457 = vmul.f32 %v2213, 1.1920929e-07
    %v2458 = vmul.f32 %v2219, 1.1920929e-07
    %v2459 = vmul.f32 %v2225, 1.1920929e-07
    %v2460 = vmul.f32 %v2231, 1.1920929e-07
    %v2461 = vmul.f32 %v2237, 1.1920929e-07
    %v2462 = vmul.f32 %v2243, 1.1920929e-07
    %v2463 = vmul.f32 %v2249, 1.1920929e-07
    %v2464 = vmul.f32 %v2255, 1.1920929e-07
    %v2465 = vmul.f32 %v2261, 1.1920929e-07
    %v2466 = vmul.f32 %v2267, 1.1920929e-07
    %v2467 = vmul.f32 %v2273, 1.1920929e-07
    %v2468 = vmul.f32 %v2279, 1.1920929e-07
    %v2469 = vmul.f32 %v2285, 1.1920929e-07
    %v2470 = vmul.f32 %v2291, 1.1920929e-07
    %v2471 = vmul.f32 %v2297, 1.1920929e-07
    %v2472 = vmul.f32 %v2303, 1.1920929e-07
    %v2473 = vmul.f32 %v2309, 1.1920929e-07
    %v2474 = vmul.f32 %v2315, 1.1920929e-07
    %v2475 = vmul.f32 %v2321, 1.1920929e-07
    %v2476 = vmul.f32 %v2327, 1.1920929e-07
    %v2477 = vmul.f32 %v2333, 1.1920929e-07
    %v2478 = vmul.f32 %v2339, 1.1920929e-07
    %v2479 = vmul.f32 %v2345, 1.1920929e-07
    %v2480 = vmul.f32 %v2351, 1.1920929e-07
    %v2481 = vmul.f32 %v2357, 1.1920929e-07
    %v2482 = vmul.f32 %v2363, 1.1920929e-07
    %v2483 = vmul.f32 %v2369, 1.1920929e-07
    %v2484 = vmul.f32 %v2375, 1.1920929e-07
    %v2485 = vmul.f32 %v2381, 1.1920929e-07
    %v2486 = vmul.f32 %v2387, 1.1920929e-07
    %v2487 = vmul.f32 %v2393, 1.1920929e-07
    %v2488 = vmul.f32 %v2399, 1.1920929e-07
    %v2489 = vmul.f32 %v2405, 1.1920929e-07
    %v2490 = vmul.f32 %v2411, 1.1920929e-07
    %v2491 = vmul.f32 %v2417, 1.1920929e-07
    %v2492 = vmul.f32 %v2423, 1.1920929e-07
    %v2493 = vmul.f32 %v2429, 1.1920929e-07
    %vm2494 = vcmp.lt.f32.partialorder %v2430, 0.4
    %vm2495 = vcmp.lt.f32.partialorder %v2431, 0.4
    %vm2496 = vcmp.lt.f32.partialorder %v2432, 0.4
    %vm2497 = vcmp.lt.f32.partialorder %v2433, 0.4
    %vm2498 = vcmp.lt.f32.partialorder %v2434, 0.4
    %vm2499 = vcmp.lt.f32.partialorder %v2435, 0.4
    %vm2500 = vcmp.lt.f32.partialorder %v2436, 0.4
    %vm2501 = vcmp.lt.f32.partialorder %v2437, 0.4
    %vm2502 = vcmp.lt.f32.partialorder %v2438, 0.4
    %vm2503 = vcmp.lt.f32.partialorder %v2439, 0.4
    %vm2504 = vcmp.lt.f32.partialorder %v2440, 0.4
    %vm2505 = vcmp.lt.f32.partialorder %v2441, 0.4
    %vm2506 = vcmp.lt.f32.partialorder %v2442, 0.4
    %vm2507 = vcmp.lt.f32.partialorder %v2443, 0.4
    %vm2508 = vcmp.lt.f32.partialorder %v2444, 0.4
    %vm2509 = vcmp.lt.f32.partialorder %v2445, 0.4
    %vm2510 = vcmp.lt.f32.partialorder %v2446, 0.4
    %vm2511 = vcmp.lt.f32.partialorder %v2447, 0.4
    %vm2512 = vcmp.lt.f32.partialorder %v2448, 0.4
    %vm2513 = vcmp.lt.f32.partialorder %v2449, 0.4
    %vm2514 = vcmp.lt.f32.partialorder %v2450, 0.4
    %vm2515 = vcmp.lt.f32.partialorder %v2451, 0.4
    %vm2516 = vcmp.lt.f32.partialorder %v2452, 0.4
    %vm2517 = vcmp.lt.f32.partialorder %v2453, 0.4
    %vm2518 = vcmp.lt.f32.partialorder %v2454, 0.4
    %vm2519 = vcmp.lt.f32.partialorder %v2455, 0.4
    %vm2520 = vcmp.lt.f32.partialorder %v2456, 0.4
    %vm2521 = vcmp.lt.f32.partialorder %v2457, 0.4
    %vm2522 = vcmp.lt.f32.partialorder %v2458, 0.4
    %vm2523 = vcmp.lt.f32.partialorder %v2459, 0.4
    %vm2524 = vcmp.lt.f32.partialorder %v2460, 0.4
    %vm2525 = vcmp.lt.f32.partialorder %v2461, 0.4
    %vm2526 = vcmp.lt.f32.partialorder %v2462, 0.4
    %vm2527 = vcmp.lt.f32.partialorder %v2463, 0.4
    %vm2528 = vcmp.lt.f32.partialorder %v2464, 0.4
    %vm2529 = vcmp.lt.f32.partialorder %v2465, 0.4
    %vm2530 = vcmp.lt.f32.partialorder %v2466, 0.4
    %vm2531 = vcmp.lt.f32.partialorder %v2467, 0.4
    %vm2532 = vcmp.lt.f32.partialorder %v2468, 0.4
    %vm2533 = vcmp.lt.f32.partialorder %v2469, 0.4
    %vm2534 = vcmp.lt.f32.partialorder %v2470, 0.4
    %vm2535 = vcmp.lt.f32.partialorder %v2471, 0.4
    %vm2536 = vcmp.lt.f32.partialorder %v2472, 0.4
    %vm2537 = vcmp.lt.f32.partialorder %v2473, 0.4
    %vm2538 = vcmp.lt.f32.partialorder %v2474, 0.4
    %vm2539 = vcmp.lt.f32.partialorder %v2475, 0.4
    %vm2540 = vcmp.lt.f32.partialorder %v2476, 0.4
    %vm2541 = vcmp.lt.f32.partialorder %v2477, 0.4
    %vm2542 = vcmp.lt.f32.partialorder %v2478, 0.4
    %vm2543 = vcmp.lt.f32.partialorder %v2479, 0.4
    %vm2544 = vcmp.lt.f32.partialorder %v2480, 0.4
    %vm2545 = vcmp.lt.f32.partialorder %v2481, 0.4
    %vm2546 = vcmp.lt.f32.partialorder %v2482, 0.4
    %vm2547 = vcmp.lt.f32.partialorder %v2483, 0.4
    %vm2548 = vcmp.lt.f32.partialorder %v2484, 0.4
    %vm2549 = vcmp.lt.f32.partialorder %v2485, 0.4
    %vm2550 = vcmp.lt.f32.partialorder %v2486, 0.4
    %vm2551 = vcmp.lt.f32.partialorder %v2487, 0.4
    %vm2552 = vcmp.lt.f32.partialorder %v2488, 0.4
    %vm2553 = vcmp.lt.f32.partialorder %v2489, 0.4
    %vm2554 = vcmp.lt.f32.partialorder %v2490, 0.4
    %vm2555 = vcmp.lt.f32.partialorder %v2491, 0.4
    %vm2556 = vcmp.lt.f32.partialorder %v2492, 0.4
    %vm2557 = vcmp.lt.f32.partialorder %v2493, 0.4
    %v2558 = vmul.f32 %v1404, 2.5
    %v2559 = vmul.f32 %v1405, 2.5
    %v2560 = vmul.f32 %v1406, 2.5
    %v2561 = vmul.f32 %v1407, 2.5
    %v2562 = vmul.f32 %v1408, 2.5
    %v2563 = vmul.f32 %v1409, 2.5
    %v2564 = vmul.f32 %v1410, 2.5
    %v2565 = vmul.f32 %v1411, 2.5
    %v2566 = vmul.f32 %v1412, 2.5
    %v2567 = vmul.f32 %v1413, 2.5
    %v2568 = vmul.f32 %v1414, 2.5
    %v2569 = vmul.f32 %v1415, 2.5
    %v2570 = vmul.f32 %v1416, 2.5
    %v2571 = vmul.f32 %v1417, 2.5
    %v2572 = vmul.f32 %v1418, 2.5
    %v2573 = vmul.f32 %v1419, 2.5
    %v2574 = vmul.f32 %v1420, 2.5
    %v2575 = vmul.f32 %v1421, 2.5
    %v2576 = vmul.f32 %v1422, 2.5
    %v2577 = vmul.f32 %v1423, 2.5
    %v2578 = vmul.f32 %v1424, 2.5
    %v2579 = vmul.f32 %v1425, 2.5
    %v2580 = vmul.f32 %v1426, 2.5
    %v2581 = vmul.f32 %v1427, 2.5
    %v2582 = vmul.f32 %v1428, 2.5
    %v2583 = vmul.f32 %v1429, 2.5
    %v2584 = vmul.f32 %v1430, 2.5
    %v2585 = vmul.f32 %v1431, 2.5
    %v2586 = vmul.f32 %v1432, 2.5
    %v2587 = vmul.f32 %v1433, 2.5
    %v2588 = vmul.f32 %v1434, 2.5
    %v2589 = vmul.f32 %v1435, 2.5
    %v2590 = vmul.f32 %v1436, 2.5
    %v2591 = vmul.f32 %v1437, 2.5
    %v2592 = vmul.f32 %v1438, 2.5
    %v2593 = vmul.f32 %v1439, 2.5
    %v2594 = vmul.f32 %v1440, 2.5
    %v2595 = vmul.f32 %v1441, 2.5
    %v2596 = vmul.f32 %v1442, 2.5
    %v2597 = vmul.f32 %v1443, 2.5
    %v2598 = vmul.f32 %v1444, 2.5
    %v2599 = vmul.f32 %v1445, 2.5
    %v2600 = vmul.f32 %v1446, 2.5
    %v2601 = vmul.f32 %v1447, 2.5
    %v2602 = vmul.f32 %v1448, 2.5
    %v2603 = vmul.f32 %v1449, 2.5
    %v2604 = vmul.f32 %v1450, 2.5
    %v2605 = vmul.f32 %v1451, 2.5
    %v2606 = vmul.f32 %v1452, 2.5
    %v2607 = vmul.f32 %v1453, 2.5
    %v2608 = vmul.f32 %v1454, 2.5
    %v2609 = vmul.f32 %v1455, 2.5
    %v2610 = vmul.f32 %v1456, 2.5
    %v2611 = vmul.f32 %v1457, 2.5
    %v2612 = vmul.f32 %v1458, 2.5
    %v2613 = vmul.f32 %v1459, 2.5
    %v2614 = vmul.f32 %v1460, 2.5
    %v2615 = vmul.f32 %v1461, 2.5
    %v2616 = vmul.f32 %v1462, 2.5
    %v2617 = vmul.f32 %v1463, 2.5
    %v2618 = vmul.f32 %v1464, 2.5
    %v2619 = vmul.f32 %v1465, 2.5
    %v2620 = vmul.f32 %v1466, 2.5
    %v2621 = vmul.f32 %v1467, 2.5
    %v2622 = vsel %vm2494, %v2558, 0.0
    %v2623 = vsel %vm2495, %v2559, 0.0
    %v2624 = vsel %vm2496, %v2560, 0.0
    %v2625 = vsel %vm2497, %v2561, 0.0
    %v2626 = vsel %vm2498, %v2562, 0.0
    %v2627 = vsel %vm2499, %v2563, 0.0
    %v2628 = vsel %vm2500, %v2564, 0.0
    %v2629 = vsel %vm2501, %v2565, 0.0
    %v2630 = vsel %vm2502, %v2566, 0.0
    %v2631 = vsel %vm2503, %v2567, 0.0
    %v2632 = vsel %vm2504, %v2568, 0.0
    %v2633 = vsel %vm2505, %v2569, 0.0
    %v2634 = vsel %vm2506, %v2570, 0.0
    %v2635 = vsel %vm2507, %v2571, 0.0
    %v2636 = vsel %vm2508, %v2572, 0.0
    %v2637 = vsel %vm2509, %v2573, 0.0
    %v2638 = vsel %vm2510, %v2574, 0.0
    %v2639 = vsel %vm2511, %v2575, 0.0
    %v2640 = vsel %vm2512, %v2576, 0.0
    %v2641 = vsel %vm2513, %v2577, 0.0
    %v2642 = vsel %vm2514, %v2578, 0.0
    %v2643 = vsel %vm2515, %v2579, 0.0
    %v2644 = vsel %vm2516, %v2580, 0.0
    %v2645 = vsel %vm2517, %v2581, 0.0
    %v2646 = vsel %vm2518, %v2582, 0.0
    %v2647 = vsel %vm2519, %v2583, 0.0
    %v2648 = vsel %vm2520, %v2584, 0.0
    %v2649 = vsel %vm2521, %v2585, 0.0
    %v2650 = vsel %vm2522, %v2586, 0.0
    %v2651 = vsel %vm2523, %v2587, 0.0
    %v2652 = vsel %vm2524, %v2588, 0.0
    %v2653 = vsel %vm2525, %v2589, 0.0
    %v2654 = vsel %vm2526, %v2590, 0.0
    %v2655 = vsel %vm2527, %v2591, 0.0
    %v2656 = vsel %vm2528, %v2592, 0.0
    %v2657 = vsel %vm2529, %v2593, 0.0
    %v2658 = vsel %vm2530, %v2594, 0.0
    %v2659 = vsel %vm2531, %v2595, 0.0
    %v2660 = vsel %vm2532, %v2596, 0.0
    %v2661 = vsel %vm2533, %v2597, 0.0
    %v2662 = vsel %vm2534, %v2598, 0.0
    %v2663 = vsel %vm2535, %v2599, 0.0
    %v2664 = vsel %vm2536, %v2600, 0.0
    %v2665 = vsel %vm2537, %v2601, 0.0
    %v2666 = vsel %vm2538, %v2602, 0.0
    %v2667 = vsel %vm2539, %v2603, 0.0
    %v2668 = vsel %vm2540, %v2604, 0.0
    %v2669 = vsel %vm2541, %v2605, 0.0
    %v2670 = vsel %vm2542, %v2606, 0.0
    %v2671 = vsel %vm2543, %v2607, 0.0
    %v2672 = vsel %vm2544, %v2608, 0.0
    %v2673 = vsel %vm2545, %v2609, 0.0
    %v2674 = vsel %vm2546, %v2610, 0.0
    %v2675 = vsel %vm2547, %v2611, 0.0
    %v2676 = vsel %vm2548, %v2612, 0.0
    %v2677 = vsel %vm2549, %v2613, 0.0
    %v2678 = vsel %vm2550, %v2614, 0.0
    %v2679 = vsel %vm2551, %v2615, 0.0
    %v2680 = vsel %vm2552, %v2616, 0.0
    %v2681 = vsel %vm2553, %v2617, 0.0
    %v2682 = vsel %vm2554, %v2618, 0.0
    %v2683 = vsel %vm2555, %v2619, 0.0
    %v2684 = vsel %vm2556, %v2620, 0.0
    %v2685 = vsel %vm2557, %v2621, 0.0
    %v2686 = vpack.c.bf16 %v2623, %v2622
    %v2687 = vpack.c.bf16 %v2625, %v2624
    %v2688 = vpack.c.bf16 %v2627, %v2626
    %v2689 = vpack.c.bf16 %v2629, %v2628
    %v2690 = vpack.c.bf16 %v2631, %v2630
    %v2691 = vpack.c.bf16 %v2633, %v2632
    %v2692 = vpack.c.bf16 %v2635, %v2634
    %v2693 = vpack.c.bf16 %v2637, %v2636
    %v2694 = vpack.c.bf16 %v2639, %v2638
    %v2695 = vpack.c.bf16 %v2641, %v2640
    %v2696 = vpack.c.bf16 %v2643, %v2642
    %v2697 = vpack.c.bf16 %v2645, %v2644
    %v2698 = vpack.c.bf16 %v2647, %v2646
    %v2699 = vpack.c.bf16 %v2649, %v2648
    %v2700 = vpack.c.bf16 %v2651, %v2650
    %v2701 = vpack.c.bf16 %v2653, %v2652
    %v2702 = vpack.c.bf16 %v2655, %v2654
    %v2703 = vpack.c.bf16 %v2657, %v2656
    %v2704 = vpack.c.bf16 %v2659, %v2658
    %v2705 = vpack.c.bf16 %v2661, %v2660
    %v2706 = vpack.c.bf16 %v2663, %v2662
    %v2707 = vpack.c.bf16 %v2665, %v2664
    %v2708 = vpack.c.bf16 %v2667, %v2666
    %v2709 = vpack.c.bf16 %v2669, %v2668
    %v2710 = vpack.c.bf16 %v2671, %v2670
    %v2711 = vpack.c.bf16 %v2673, %v2672
    %v2712 = vpack.c.bf16 %v2675, %v2674
    %v2713 = vpack.c.bf16 %v2677, %v2676
    %v2714 = vpack.c.bf16 %v2679, %v2678
    %v2715 = vpack.c.bf16 %v2681, %v2680
    %v2716 = vpack.c.bf16 %v2683, %v2682
    %v2717 = vpack.c.bf16 %v2685, %v2684
    %v2750 = vunpack.c.l.b16 %v2686
    %v2751 = vunpack.c.h.b16 %v2686
    %v2752 = vunpack.c.l.b16 %v2687
    %v2753 = vunpack.c.h.b16 %v2687
    %v2754 = vunpack.c.l.b16 %v2688
    %v2755 = vunpack.c.h.b16 %v2688
    %v2756 = vunpack.c.l.b16 %v2689
    %v2757 = vunpack.c.h.b16 %v2689
    %v2758 = vunpack.c.l.b16 %v2690
    %v2759 = vunpack.c.h.b16 %v2690
    %v2760 = vunpack.c.l.b16 %v2691
    %v2761 = vunpack.c.h.b16 %v2691
    %v2762 = vunpack.c.l.b16 %v2692
    %v2763 = vunpack.c.h.b16 %v2692
    %v2764 = vunpack.c.l.b16 %v2693
    %v2765 = vunpack.c.h.b16 %v2693
    %v2766 = vunpack.c.l.b16 %v2694
    %v2767 = vunpack.c.h.b16 %v2694
    %v2768 = vunpack.c.l.b16 %v2695
    %v2769 = vunpack.c.h.b16 %v2695
    %v2770 = vunpack.c.l.b16 %v2696
    %v2771 = vunpack.c.h.b16 %v2696
    %v2772 = vunpack.c.l.b16 %v2697
    %v2773 = vunpack.c.h.b16 %v2697
    %v2774 = vunpack.c.l.b16 %v2698
    %v2775 = vunpack.c.h.b16 %v2698
    %v2776 = vunpack.c.l.b16 %v2699
    %v2777 = vunpack.c.h.b16 %v2699
    %v2778 = vunpack.c.l.b16 %v2700
    %v2779 = vunpack.c.h.b16 %v2700
    %v2780 = vunpack.c.l.b16 %v2701
    %v2781 = vunpack.c.h.b16 %v2701
    %v2782 = vunpack.c.l.b16 %v2702
    %v2783 = vunpack.c.h.b16 %v2702
    %v2784 = vunpack.c.l.b16 %v2703
    %v2785 = vunpack.c.h.b16 %v2703
    %v2786 = vunpack.c.l.b16 %v2704
    %v2787 = vunpack.c.h.b16 %v2704
    %v2788 = vunpack.c.l.b16 %v2705
    %v2789 = vunpack.c.h.b16 %v2705
    %v2790 = vunpack.c.l.b16 %v2706
    %v2791 = vunpack.c.h.b16 %v2706
    %v2792 = vunpack.c.l.b16 %v2707
    %v2793 = vunpack.c.h.b16 %v2707
    %v2794 = vunpack.c.l.b16 %v2708
    %v2795 = vunpack.c.h.b16 %v2708
    %v2796 = vunpack.c.l.b16 %v2709
    %v2797 = vunpack.c.h.b16 %v2709
    %v2798 = vunpack.c.l.b16 %v2710
    %v2799 = vunpack.c.h.b16 %v2710
    %v2800 = vunpack.c.l.b16 %v2711
    %v2801 = vunpack.c.h.b16 %v2711
    %v2802 = vunpack.c.l.b16 %v2712
    %v2803 = vunpack.c.h.b16 %v2712
    %v2804 = vunpack.c.l.b16 %v2713
    %v2805 = vunpack.c.h.b16 %v2713
    %v2806 = vunpack.c.l.b16 %v2714
    %v2807 = vunpack.c.h.b16 %v2714
    %v2808 = vunpack.c.l.b16 %v2715
    %v2809 = vunpack.c.h.b16 %v2715
    %v2810 = vunpack.c.l.b16 %v2716
    %v2811 = vunpack.c.h.b16 %v2716
    %v2812 = vunpack.c.l.b16 %v2717
    %v2813 = vunpack.c.h.b16 %v2717
    %v2814 = vpack.c.b16 %v2750, %v2750
    %v2815 = vpack.c.b16 %v2751, %v2751
    %v2816 = vpack.c.b16 %v2752, %v2752
    %v2817 = vpack.c.b16 %v2753, %v2753
    %v2818 = vpack.c.b16 %v2754, %v2754
    %v2819 = vpack.c.b16 %v2755, %v2755
    %v2820 = vpack.c.b16 %v2756, %v2756
    %v2821 = vpack.c.b16 %v2757, %v2757
    %v2822 = vpack.c.b16 %v2758, %v2758
    %v2823 = vpack.c.b16 %v2759, %v2759
    %v2824 = vpack.c.b16 %v2760, %v2760
    %v2825 = vpack.c.b16 %v2761, %v2761
    %v2826 = vpack.c.b16 %v2762, %v2762
    %v2827 = vpack.c.b16 %v2763, %v2763
    %v2828 = vpack.c.b16 %v2764, %v2764
    %v2829 = vpack.c.b16 %v2765, %v2765
    %v2830 = vpack.c.b16 %v2766, %v2766
    %v2831 = vpack.c.b16 %v2767, %v2767
    %v2832 = vpack.c.b16 %v2768, %v2768
    %v2833 = vpack.c.b16 %v2769, %v2769
    %v2834 = vpack.c.b16 %v2770, %v2770
    %v2835 = vpack.c.b16 %v2771, %v2771
    %v2836 = vpack.c.b16 %v2772, %v2772
    %v2837 = vpack.c.b16 %v2773, %v2773
    %v2838 = vpack.c.b16 %v2774, %v2774
    %v2839 = vpack.c.b16 %v2775, %v2775
    %v2840 = vpack.c.b16 %v2776, %v2776
    %v2841 = vpack.c.b16 %v2777, %v2777
    %v2842 = vpack.c.b16 %v2778, %v2778
    %v2843 = vpack.c.b16 %v2779, %v2779
    %v2844 = vpack.c.b16 %v2780, %v2780
    %v2845 = vpack.c.b16 %v2781, %v2781
    %v2846 = vpack.c.b16 %v2782, %v2782
    %v2847 = vpack.c.b16 %v2783, %v2783
    %v2848 = vpack.c.b16 %v2784, %v2784
    %v2849 = vpack.c.b16 %v2785, %v2785
    %v2850 = vpack.c.b16 %v2786, %v2786
    %v2851 = vpack.c.b16 %v2787, %v2787
    %v2852 = vpack.c.b16 %v2788, %v2788
    %v2853 = vpack.c.b16 %v2789, %v2789
    %v2854 = vpack.c.b16 %v2790, %v2790
    %v2855 = vpack.c.b16 %v2791, %v2791
    %v2856 = vpack.c.b16 %v2792, %v2792
    %v2857 = vpack.c.b16 %v2793, %v2793
    %v2858 = vpack.c.b16 %v2794, %v2794
    %v2859 = vpack.c.b16 %v2795, %v2795
    %v2860 = vpack.c.b16 %v2796, %v2796
    %v2861 = vpack.c.b16 %v2797, %v2797
    %v2862 = vpack.c.b16 %v2798, %v2798
    %v2863 = vpack.c.b16 %v2799, %v2799
    %v2864 = vpack.c.b16 %v2800, %v2800
    %v2865 = vpack.c.b16 %v2801, %v2801
    %v2866 = vpack.c.b16 %v2802, %v2802
    %v2867 = vpack.c.b16 %v2803, %v2803
    %v2868 = vpack.c.b16 %v2804, %v2804
    %v2869 = vpack.c.b16 %v2805, %v2805
    %v2870 = vpack.c.b16 %v2806, %v2806
    %v2871 = vpack.c.b16 %v2807, %v2807
    %v2872 = vpack.c.b16 %v2808, %v2808
    %v2873 = vpack.c.b16 %v2809, %v2809
    %v2874 = vpack.c.b16 %v2810, %v2810
    %v2875 = vpack.c.b16 %v2811, %v2811
    %v2876 = vpack.c.b16 %v2812, %v2812
    %v2877 = vpack.c.b16 %v2813, %v2813
    %2942 = vst [vmem:[#allocation7] sm:$0xf] %v2814
    %2943 = vst [vmem:[#allocation7 + $0x4] sm:$0xf] %v2815
    %2944 = vst [vmem:[#allocation7 + $0x8] sm:$0xf] %v2816
    %2945 = vst [vmem:[#allocation7 + $0xc] sm:$0xf] %v2817
    %2946 = vst [vmem:[#allocation7 + $0x10] sm:$0xf] %v2818
    %2947 = vst [vmem:[#allocation7 + $0x14] sm:$0xf] %v2819
    %2948 = vst [vmem:[#allocation7 + $0x18] sm:$0xf] %v2820
    %2949 = vst [vmem:[#allocation7 + $0x1c] sm:$0xf] %v2821
    %2950 = vst [vmem:[#allocation7 + $0x20] sm:$0xf] %v2822
    %2951 = vst [vmem:[#allocation7 + $0x24] sm:$0xf] %v2823
    %2952 = vst [vmem:[#allocation7 + $0x28] sm:$0xf] %v2824
    %2953 = vst [vmem:[#allocation7 + $0x2c] sm:$0xf] %v2825
    %2954 = vst [vmem:[#allocation7 + $0x30] sm:$0xf] %v2826
    %2955 = vst [vmem:[#allocation7 + $0x34] sm:$0xf] %v2827
    %2956 = vst [vmem:[#allocation7 + $0x38] sm:$0xf] %v2828
    %2957 = vst [vmem:[#allocation7 + $0x3c] sm:$0xf] %v2829
    %2958 = vst [vmem:[#allocation7 + $0x40] sm:$0xf] %v2830
    %2959 = vst [vmem:[#allocation7 + $0x44] sm:$0xf] %v2831
    %2960 = vst [vmem:[#allocation7 + $0x48] sm:$0xf] %v2832
    %2961 = vst [vmem:[#allocation7 + $0x4c] sm:$0xf] %v2833
    %2962 = vst [vmem:[#allocation7 + $0x50] sm:$0xf] %v2834
    %2963 = vst [vmem:[#allocation7 + $0x54] sm:$0xf] %v2835
    %2964 = vst [vmem:[#allocation7 + $0x58] sm:$0xf] %v2836
    %2965 = vst [vmem:[#allocation7 + $0x5c] sm:$0xf] %v2837
    %2966 = vst [vmem:[#allocation7 + $0x60] sm:$0xf] %v2838
    %2967 = vst [vmem:[#allocation7 + $0x64] sm:$0xf] %v2839
    %2968 = vst [vmem:[#allocation7 + $0x68] sm:$0xf] %v2840
    %2969 = vst [vmem:[#allocation7 + $0x6c] sm:$0xf] %v2841
    %2970 = vst [vmem:[#allocation7 + $0x70] sm:$0xf] %v2842
    %2971 = vst [vmem:[#allocation7 + $0x74] sm:$0xf] %v2843
    %2972 = vst [vmem:[#allocation7 + $0x78] sm:$0xf] %v2844
    %2973 = vst [vmem:[#allocation7 + $0x7c] sm:$0xf] %v2845
    %2974 = vst [vmem:[#allocation7 + $0x80] sm:$0xf] %v2846
    %2975 = vst [vmem:[#allocation7 + $0x84] sm:$0xf] %v2847
    %2976 = vst [vmem:[#allocation7 + $0x88] sm:$0xf] %v2848
    %2977 = vst [vmem:[#allocation7 + $0x8c] sm:$0xf] %v2849
    %2978 = vst [vmem:[#allocation7 + $0x90] sm:$0xf] %v2850
    %2979 = vst [vmem:[#allocation7 + $0x94] sm:$0xf] %v2851
    %2980 = vst [vmem:[#allocation7 + $0x98] sm:$0xf] %v2852
    %2981 = vst [vmem:[#allocation7 + $0x9c] sm:$0xf] %v2853
    %2982 = vst [vmem:[#allocation7 + $0xa0] sm:$0xf] %v2854
    %2983 = vst [vmem:[#allocation7 + $0xa4] sm:$0xf] %v2855
    %2984 = vst [vmem:[#allocation7 + $0xa8] sm:$0xf] %v2856
    %2985 = vst [vmem:[#allocation7 + $0xac] sm:$0xf] %v2857
    %2986 = vst [vmem:[#allocation7 + $0xb0] sm:$0xf] %v2858
    %2987 = vst [vmem:[#allocation7 + $0xb4] sm:$0xf] %v2859
    %2988 = vst [vmem:[#allocation7 + $0xb8] sm:$0xf] %v2860
    %2989 = vst [vmem:[#allocation7 + $0xbc] sm:$0xf] %v2861
    %2990 = vst [vmem:[#allocation7 + $0xc0] sm:$0xf] %v2862
    %2991 = vst [vmem:[#allocation7 + $0xc4] sm:$0xf] %v2863
    %2992 = vst [vmem:[#allocation7 + $0xc8] sm:$0xf] %v2864
    %2993 = vst [vmem:[#allocation7 + $0xcc] sm:$0xf] %v2865
    %2994 = vst [vmem:[#allocation7 + $0xd0] sm:$0xf] %v2866
    %2995 = vst [vmem:[#allocation7 + $0xd4] sm:$0xf] %v2867
    %2996 = vst [vmem:[#allocation7 + $0xd8] sm:$0xf] %v2868
    %2997 = vst [vmem:[#allocation7 + $0xdc] sm:$0xf] %v2869
    %2998 = vst [vmem:[#allocation7 + $0xe0] sm:$0xf] %v2870
    %2999 = vst [vmem:[#allocation7 + $0xe4] sm:$0xf] %v2871
    %3000 = vst [vmem:[#allocation7 + $0xe8] sm:$0xf] %v2872
    %3001 = vst [vmem:[#allocation7 + $0xec] sm:$0xf] %v2873
    %3002 = vst [vmem:[#allocation7 + $0xf0] sm:$0xf] %v2874
    %3003 = vst [vmem:[#allocation7 + $0xf4] sm:$0xf] %v2875
    %3004 = vst [vmem:[#allocation7 + $0xf8] sm:$0xf] %v2876
    %3005 = vst [vmem:[#allocation7 + $0xfc] sm:$0xf] %v2877
    // Predicated region
    $region30: #{tpu_custom_call.1} parent=1 // pred_check
      _
    $region31: #{tpu_custom_call.1} parent=1 // pred_check_branch
      %3007 = sbr.rel (0) target = $region33
    $region32: #{tpu_custom_call.1} parent=1 // pred_region
      %s3009 = ssub.s32 4096, 4096
      %3010 = vsyncadd [#allocation4], %s3009
      %s3011 = sshll.u32 [#allocation7], 4
      %s3012 = int_to_ptr.vmem [resolvable:$true] %s3011
      %3017 = dma.vmem_to_hbm [thread:$0]  %s3012, 4096, %s5, [#allocation4], 64, 64, 4
    $region33: #{tpu_custom_call.1} parent=1 // pred_fallthru
      _
    // Predicated region
    $region34: #{tpu_custom_call.1} parent=1 // pred_check
      _
    $region35: #{tpu_custom_call.1} parent=1 // pred_check_branch
      %3019 = sbr.rel (0) target = $region37
    $region36: #{tpu_custom_call.1} parent=1 // pred_region
      %3020 = dma.done [#allocation4], 4096
    $region37: #{tpu_custom_call.1} parent=1 // pred_fallthru
      _
    %3021 = vsyncpa [#allocation3], 1
    %3022 = vsyncpa [#allocation6], 1
    %3023 = vsyncpa [#allocation4], 1

</llo_original>
